<compile_context>
chip_gen: v6e
topology: v6e:2x2x1
jax: 0.10.0
libtpu: 0.0.40
codegen_flags: <defaults>
</compile_context>

<pallas_src>
import functools

import jax
import jax.numpy as jnp
from jax.experimental import pallas as pl
from jax.experimental.pallas import tpu as pltpu

HIDDEN = 128      # fixed by module (hidden_size=128)
EMBED = 64        # fixed by module (embedding: input_size -> 64)
HEADS_PAD = 128   # lane-dense fused head output width (lat: cols 0:3, lon: cols 3:5)


def _maneuver_kernel(x_ref, w_emb_ref, b_emb_ref, w_ih_ref, w_hh_ref, b_g_ref,
                     w_heads_ref, b_heads_ref, out_ref, *, T, B):
    # ---- prologue (hoisted out of the recurrence): batched over all T*B rows ----
    emb = (jnp.dot(x_ref[...], w_emb_ref[...], preferred_element_type=jnp.float32)
           + b_emb_ref[...])
    emb = jnp.where(emb > 0, emb, 0.1 * emb)                       # LeakyReLU(0.1)
    gates_x = (jnp.dot(emb, w_ih_ref[...], preferred_element_type=jnp.float32)
               + b_g_ref[...])                                     # (T*B, 4H), biases folded in once

    w_hh = w_hh_ref[...]                                           # load recurrent weight once

    # ---- LSTM recurrence, fully unrolled over T; h/c carried in registers ----
    h = jnp.zeros((B, HIDDEN), jnp.float32)
    c = jnp.zeros((B, HIDDEN), jnp.float32)
    for t in range(T):
        gates = gates_x[t * B:(t + 1) * B, :] + jnp.dot(
            h, w_hh, preferred_element_type=jnp.float32)
        # PyTorch gate order: i, f, g, o
        i_g = jax.nn.sigmoid(gates[:, 0 * HIDDEN:1 * HIDDEN])
        f_g = jax.nn.sigmoid(gates[:, 1 * HIDDEN:2 * HIDDEN])
        g_g = jnp.tanh(gates[:, 2 * HIDDEN:3 * HIDDEN])
        o_g = jax.nn.sigmoid(gates[:, 3 * HIDDEN:4 * HIDDEN])
        c = f_g * c + i_g * g_g
        h = o_g * jnp.tanh(c)

    # ---- fused heads: one lane-dense (HIDDEN -> 128) matmul + masked softmax ----
    logits = (jnp.dot(h, w_heads_ref[...], preferred_element_type=jnp.float32)
              + b_heads_ref[...])                                  # (B, 128)
    lane = jax.lax.broadcasted_iota(jnp.int32, logits.shape, 1)
    neg = jnp.float32(-1e30)

    def masked_softmax(mask):
        ml = jnp.where(mask, logits, neg)
        m = jnp.max(ml, axis=1, keepdims=True)
        e = jnp.exp(ml - m)                                        # masked lanes underflow to 0
        s = jnp.sum(e, axis=1, keepdims=True)
        # exact divide: epilogue runs once, keeps tight f32 parity with the reference
        return e / s

    lat_sm = masked_softmax(lane < 3)
    lon_sm = masked_softmax((lane >= 3) & (lane < 5))
    out_ref[...] = lat_sm + lon_sm                                 # lat in cols 0:3, lon in 3:5


def maneuver_forward(x, params):
    """x: (T, B, input_size) float32. Returns (lat_pred (B,3), lon_pred (B,2))."""
    T, B, D_in = x.shape
    (w_emb_t, b_emb, w_ih_t, w_hh_t, b_gates, w_lat_t, b_lat, w_lon_t, b_lon) = params

    # Fuse the two heads into one lane-dense projection (lat cols 0:3, lon cols 3:5).
    w_heads = jnp.zeros((HIDDEN, HEADS_PAD), jnp.float32)
    w_heads = w_heads.at[:, 0:3].set(w_lat_t).at[:, 3:5].set(w_lon_t)
    b_heads = jnp.zeros((1, HEADS_PAD), jnp.float32)
    b_heads = b_heads.at[:, 0:3].set(b_lat).at[:, 3:5].set(b_lon)

    x2d = x.reshape(T * B, D_in)   # time-major rows: row = t*B + b

    vmem = pl.BlockSpec(memory_space=pltpu.MemorySpace.VMEM)
    out = pl.pallas_call(
        functools.partial(_maneuver_kernel, T=T, B=B),
        out_shape=jax.ShapeDtypeStruct((B, HEADS_PAD), jnp.float32),
        in_specs=[vmem] * 8,
        out_specs=vmem,
    )(x2d, w_emb_t, b_emb, w_ih_t, w_hh_t, b_gates, w_heads, b_heads)

    return out[:, 0:3], out[:, 3:5]


def init_params(key, input_size):
    ks = jax.random.split(key, 9)
    s = 0.1
    # weights stored pre-transposed (in_dim, out_dim) so the kernel does x @ W
    w_emb_t = s * jax.random.normal(ks[0], (input_size, EMBED), jnp.float32)
    b_emb = s * jax.random.normal(ks[1], (1, EMBED), jnp.float32)
    w_ih_t = s * jax.random.normal(ks[2], (EMBED, 4 * HIDDEN), jnp.float32)
    w_hh_t = s * jax.random.normal(ks[3], (HIDDEN, 4 * HIDDEN), jnp.float32)
    b_ih = s * jax.random.normal(ks[4], (1, 4 * HIDDEN), jnp.float32)
    b_hh = s * jax.random.normal(ks[5], (1, 4 * HIDDEN), jnp.float32)
    b_gates = b_ih + b_hh
    w_lat_t = s * jax.random.normal(ks[6], (HIDDEN, 3), jnp.float32)
    b_lat = s * jax.random.normal(ks[7], (1, 3), jnp.float32)
    w_lon_t = s * jax.random.normal(ks[8], (HIDDEN, 2), jnp.float32)
    b_lon = jnp.zeros((1, 2), jnp.float32)
    return (w_emb_t, b_emb, w_ih_t, w_hh_t, b_gates, w_lat_t, b_lat, w_lon_t, b_lon)


def reference_forward(x, params):
    """Pure-JAX reference mirroring the PyTorch module."""
    (w_emb_t, b_emb, w_ih_t, w_hh_t, b_gates, w_lat_t, b_lat, w_lon_t, b_lon) = params
    T, B, _ = x.shape
    h = jnp.zeros((B, HIDDEN), jnp.float32)
    c = jnp.zeros((B, HIDDEN), jnp.float32)
    for t in range(T):
        emb = x[t] @ w_emb_t + b_emb
        emb = jnp.where(emb > 0, emb, 0.1 * emb)
        gates = emb @ w_ih_t + h @ w_hh_t + b_gates
        i_g = jax.nn.sigmoid(gates[:, 0 * HIDDEN:1 * HIDDEN])
        f_g = jax.nn.sigmoid(gates[:, 1 * HIDDEN:2 * HIDDEN])
        g_g = jnp.tanh(gates[:, 2 * HIDDEN:3 * HIDDEN])
        o_g = jax.nn.sigmoid(gates[:, 3 * HIDDEN:4 * HIDDEN])
        c = f_g * c + i_g * g_g
        h = o_g * jnp.tanh(c)
    lat = jax.nn.softmax(h @ w_lat_t + b_lat, axis=1)
    lon = jax.nn.softmax(h @ w_lon_t + b_lon, axis=1)
    return lat, lon


if __name__ == "__main__":
    key = jax.random.PRNGKey(0)
    k_x, k_p = jax.random.split(key)

    T, B, INPUT_SIZE = 8, 2, 16
    x = jax.random.normal(k_x, (T, B, INPUT_SIZE), jnp.float32)
    params = init_params(k_p, INPUT_SIZE)

    fwd = jax.jit(maneuver_forward)
    lat_pred, lon_pred = fwd(x, params)
    jax.block_until_ready((lat_pred, lon_pred))

    lat_ref, lon_ref = reference_forward(x, params)
    assert lat_pred.shape == (B, 3) and lon_pred.shape == (B, 2)
    assert jnp.allclose(lat_pred, lat_ref, atol=2e-5, rtol=2e-5)
    assert jnp.allclose(lon_pred, lon_ref, atol=2e-5, rtol=2e-5)

    print("KERNEL_OK")
</pallas_src>

<mosaic_0001>
module attributes {stable_mosaic.version = 11 : i64} {
  func.func @_maneuver_kernel(%arg0: memref<16x16xf32, #tpu.memory_space<vmem>>, %arg1: memref<16x64xf32, #tpu.memory_space<vmem>>, %arg2: memref<1x64xf32, #tpu.memory_space<vmem>>, %arg3: memref<64x512xf32, #tpu.memory_space<vmem>>, %arg4: memref<128x512xf32, #tpu.memory_space<vmem>>, %arg5: memref<1x512xf32, #tpu.memory_space<vmem>>, %arg6: memref<128x128xf32, #tpu.memory_space<vmem>>, %arg7: memref<1x128xf32, #tpu.memory_space<vmem>>, %arg8: memref<2x128xf32, #tpu.memory_space<vmem>>) attributes {dimension_semantics = [], scalar_prefetch = 0 : i64, scratch_operands = 0 : i64, tpu.core_type = #tpu.core_type<tc>} {
    %c0 = arith.constant 0 : index
    %c0_0 = arith.constant 0 : index
    %0 = vector.load %arg0[%c0, %c0_0] : memref<16x16xf32, #tpu.memory_space<vmem>>, vector<16x16xf32>
    %c0_1 = arith.constant 0 : index
    %c0_2 = arith.constant 0 : index
    %1 = vector.load %arg1[%c0_1, %c0_2] : memref<16x64xf32, #tpu.memory_space<vmem>>, vector<16x64xf32>
    %cst = arith.constant dense<0.000000e+00> : vector<16x64xf32>
    %2 = tpu.matmul %0, %1, %cst {dimension_numbers = #tpu.dot_dimension_numbers<[1], [0], [0], [1], [0, 0, 1, 1], [], []>} : vector<16x16xf32>, vector<16x64xf32>, vector<16x64xf32> -> vector<16x64xf32>
    %c0_3 = arith.constant 0 : index
    %c0_4 = arith.constant 0 : index
    %3 = vector.load %arg2[%c0_3, %c0_4] : memref<1x64xf32, #tpu.memory_space<vmem>>, vector<1x64xf32>
    %4 = vector.broadcast %3 : vector<1x64xf32> to vector<16x64xf32>
    %5 = arith.addf %2, %4 : vector<16x64xf32>
    %cst_5 = arith.constant 0.000000e+00 : f32
    %6 = vector.broadcast %cst_5 : f32 to vector<16x64xf32>
    %7 = arith.cmpf ogt, %5, %6 : vector<16x64xf32>
    %cst_6 = arith.constant 1.000000e-01 : f32
    %8 = vector.broadcast %cst_6 : f32 to vector<16x64xf32>
    %9 = arith.mulf %8, %5 : vector<16x64xf32>
    %10 = arith.select %7, %5, %9 : vector<16x64xi1>, vector<16x64xf32>
    %c0_7 = arith.constant 0 : index
    %c0_8 = arith.constant 0 : index
    %11 = vector.load %arg3[%c0_7, %c0_8] : memref<64x512xf32, #tpu.memory_space<vmem>>, vector<64x512xf32>
    %cst_9 = arith.constant dense<0.000000e+00> : vector<16x512xf32>
    %12 = tpu.matmul %10, %11, %cst_9 {dimension_numbers = #tpu.dot_dimension_numbers<[1], [0], [0], [1], [0, 0, 1, 1], [], []>} : vector<16x64xf32>, vector<64x512xf32>, vector<16x512xf32> -> vector<16x512xf32>
    %c0_10 = arith.constant 0 : index
    %c0_11 = arith.constant 0 : index
    %13 = vector.load %arg5[%c0_10, %c0_11] : memref<1x512xf32, #tpu.memory_space<vmem>>, vector<1x512xf32>
    %14 = vector.broadcast %13 : vector<1x512xf32> to vector<16x512xf32>
    %15 = arith.addf %12, %14 : vector<16x512xf32>
    %c0_12 = arith.constant 0 : index
    %c0_13 = arith.constant 0 : index
    %16 = vector.load %arg4[%c0_12, %c0_13] : memref<128x512xf32, #tpu.memory_space<vmem>>, vector<128x512xf32>
    %cst_14 = arith.constant 0.000000e+00 : f32
    %17 = vector.broadcast %cst_14 : f32 to vector<2x128xf32>
    %cst_15 = arith.constant 0.000000e+00 : f32
    %18 = vector.broadcast %cst_15 : f32 to vector<2x128xf32>
    %19 = vector.extract_strided_slice %15 {offsets = [0, 0], sizes = [2, 512], strides = [1, 1]} : vector<16x512xf32> to vector<2x512xf32>
    %cst_16 = arith.constant dense<0.000000e+00> : vector<2x512xf32>
    %20 = tpu.matmul %17, %16, %cst_16 {dimension_numbers = #tpu.dot_dimension_numbers<[1], [0], [0], [1], [0, 0, 1, 1], [], []>} : vector<2x128xf32>, vector<128x512xf32>, vector<2x512xf32> -> vector<2x512xf32>
    %21 = arith.addf %19, %20 : vector<2x512xf32>
    %22 = vector.extract_strided_slice %21 {offsets = [0, 0], sizes = [2, 128], strides = [1, 1]} : vector<2x512xf32> to vector<2x128xf32>
    %23 = arith.negf %22 : vector<2x128xf32>
    %24 = math.exp %23 : vector<2x128xf32>
    %cst_17 = arith.constant 1.000000e+00 : f32
    %25 = vector.broadcast %cst_17 : f32 to vector<2x128xf32>
    %26 = arith.addf %25, %24 : vector<2x128xf32>
    %27 = arith.divf %25, %26 : vector<2x128xf32>
    %28 = vector.extract_strided_slice %21 {offsets = [0, 128], sizes = [2, 128], strides = [1, 1]} : vector<2x512xf32> to vector<2x128xf32>
    %29 = arith.negf %28 : vector<2x128xf32>
    %30 = math.exp %29 : vector<2x128xf32>
    %cst_18 = arith.constant 1.000000e+00 : f32
    %31 = vector.broadcast %cst_18 : f32 to vector<2x128xf32>
    %32 = arith.addf %31, %30 : vector<2x128xf32>
    %33 = arith.divf %31, %32 : vector<2x128xf32>
    %34 = vector.extract_strided_slice %21 {offsets = [0, 256], sizes = [2, 128], strides = [1, 1]} : vector<2x512xf32> to vector<2x128xf32>
    %35 = math.tanh %34 : vector<2x128xf32>
    %36 = vector.extract_strided_slice %21 {offsets = [0, 384], sizes = [2, 128], strides = [1, 1]} : vector<2x512xf32> to vector<2x128xf32>
    %37 = arith.negf %36 : vector<2x128xf32>
    %38 = math.exp %37 : vector<2x128xf32>
    %cst_19 = arith.constant 1.000000e+00 : f32
    %39 = vector.broadcast %cst_19 : f32 to vector<2x128xf32>
    %40 = arith.addf %39, %38 : vector<2x128xf32>
    %41 = arith.divf %39, %40 : vector<2x128xf32>
    %42 = arith.mulf %33, %18 : vector<2x128xf32>
    %43 = arith.mulf %27, %35 : vector<2x128xf32>
    %44 = arith.addf %42, %43 : vector<2x128xf32>
    %45 = math.tanh %44 : vector<2x128xf32>
    %46 = arith.mulf %41, %45 : vector<2x128xf32>
    %47 = vector.extract_strided_slice %15 {offsets = [2, 0], sizes = [2, 512], strides = [1, 1]} : vector<16x512xf32> to vector<2x512xf32>
    %cst_20 = arith.constant dense<0.000000e+00> : vector<2x512xf32>
    %48 = tpu.matmul %46, %16, %cst_20 {dimension_numbers = #tpu.dot_dimension_numbers<[1], [0], [0], [1], [0, 0, 1, 1], [], []>} : vector<2x128xf32>, vector<128x512xf32>, vector<2x512xf32> -> vector<2x512xf32>
    %49 = arith.addf %47, %48 : vector<2x512xf32>
    %50 = vector.extract_strided_slice %49 {offsets = [0, 0], sizes = [2, 128], strides = [1, 1]} : vector<2x512xf32> to vector<2x128xf32>
    %51 = arith.negf %50 : vector<2x128xf32>
    %52 = math.exp %51 : vector<2x128xf32>
    %cst_21 = arith.constant 1.000000e+00 : f32
    %53 = vector.broadcast %cst_21 : f32 to vector<2x128xf32>
    %54 = arith.addf %53, %52 : vector<2x128xf32>
    %55 = arith.divf %53, %54 : vector<2x128xf32>
    %56 = vector.extract_strided_slice %49 {offsets = [0, 128], sizes = [2, 128], strides = [1, 1]} : vector<2x512xf32> to vector<2x128xf32>
    %57 = arith.negf %56 : vector<2x128xf32>
    %58 = math.exp %57 : vector<2x128xf32>
    %cst_22 = arith.constant 1.000000e+00 : f32
    %59 = vector.broadcast %cst_22 : f32 to vector<2x128xf32>
    %60 = arith.addf %59, %58 : vector<2x128xf32>
    %61 = arith.divf %59, %60 : vector<2x128xf32>
    %62 = vector.extract_strided_slice %49 {offsets = [0, 256], sizes = [2, 128], strides = [1, 1]} : vector<2x512xf32> to vector<2x128xf32>
    %63 = math.tanh %62 : vector<2x128xf32>
    %64 = vector.extract_strided_slice %49 {offsets = [0, 384], sizes = [2, 128], strides = [1, 1]} : vector<2x512xf32> to vector<2x128xf32>
    %65 = arith.negf %64 : vector<2x128xf32>
    %66 = math.exp %65 : vector<2x128xf32>
    %cst_23 = arith.constant 1.000000e+00 : f32
    %67 = vector.broadcast %cst_23 : f32 to vector<2x128xf32>
    %68 = arith.addf %67, %66 : vector<2x128xf32>
    %69 = arith.divf %67, %68 : vector<2x128xf32>
    %70 = arith.mulf %61, %44 : vector<2x128xf32>
    %71 = arith.mulf %55, %63 : vector<2x128xf32>
    %72 = arith.addf %70, %71 : vector<2x128xf32>
    %73 = math.tanh %72 : vector<2x128xf32>
    %74 = arith.mulf %69, %73 : vector<2x128xf32>
    %75 = vector.extract_strided_slice %15 {offsets = [4, 0], sizes = [2, 512], strides = [1, 1]} : vector<16x512xf32> to vector<2x512xf32>
    %cst_24 = arith.constant dense<0.000000e+00> : vector<2x512xf32>
    %76 = tpu.matmul %74, %16, %cst_24 {dimension_numbers = #tpu.dot_dimension_numbers<[1], [0], [0], [1], [0, 0, 1, 1], [], []>} : vector<2x128xf32>, vector<128x512xf32>, vector<2x512xf32> -> vector<2x512xf32>
    %77 = arith.addf %75, %76 : vector<2x512xf32>
    %78 = vector.extract_strided_slice %77 {offsets = [0, 0], sizes = [2, 128], strides = [1, 1]} : vector<2x512xf32> to vector<2x128xf32>
    %79 = arith.negf %78 : vector<2x128xf32>
    %80 = math.exp %79 : vector<2x128xf32>
    %cst_25 = arith.constant 1.000000e+00 : f32
    %81 = vector.broadcast %cst_25 : f32 to vector<2x128xf32>
    %82 = arith.addf %81, %80 : vector<2x128xf32>
    %83 = arith.divf %81, %82 : vector<2x128xf32>
    %84 = vector.extract_strided_slice %77 {offsets = [0, 128], sizes = [2, 128], strides = [1, 1]} : vector<2x512xf32> to vector<2x128xf32>
    %85 = arith.negf %84 : vector<2x128xf32>
    %86 = math.exp %85 : vector<2x128xf32>
    %cst_26 = arith.constant 1.000000e+00 : f32
    %87 = vector.broadcast %cst_26 : f32 to vector<2x128xf32>
    %88 = arith.addf %87, %86 : vector<2x128xf32>
    %89 = arith.divf %87, %88 : vector<2x128xf32>
    %90 = vector.extract_strided_slice %77 {offsets = [0, 256], sizes = [2, 128], strides = [1, 1]} : vector<2x512xf32> to vector<2x128xf32>
    %91 = math.tanh %90 : vector<2x128xf32>
    %92 = vector.extract_strided_slice %77 {offsets = [0, 384], sizes = [2, 128], strides = [1, 1]} : vector<2x512xf32> to vector<2x128xf32>
    %93 = arith.negf %92 : vector<2x128xf32>
    %94 = math.exp %93 : vector<2x128xf32>
    %cst_27 = arith.constant 1.000000e+00 : f32
    %95 = vector.broadcast %cst_27 : f32 to vector<2x128xf32>
    %96 = arith.addf %95, %94 : vector<2x128xf32>
    %97 = arith.divf %95, %96 : vector<2x128xf32>
    %98 = arith.mulf %89, %72 : vector<2x128xf32>
    %99 = arith.mulf %83, %91 : vector<2x128xf32>
    %100 = arith.addf %98, %99 : vector<2x128xf32>
    %101 = math.tanh %100 : vector<2x128xf32>
    %102 = arith.mulf %97, %101 : vector<2x128xf32>
    %103 = vector.extract_strided_slice %15 {offsets = [6, 0], sizes = [2, 512], strides = [1, 1]} : vector<16x512xf32> to vector<2x512xf32>
    %cst_28 = arith.constant dense<0.000000e+00> : vector<2x512xf32>
    %104 = tpu.matmul %102, %16, %cst_28 {dimension_numbers = #tpu.dot_dimension_numbers<[1], [0], [0], [1], [0, 0, 1, 1], [], []>} : vector<2x128xf32>, vector<128x512xf32>, vector<2x512xf32> -> vector<2x512xf32>
    %105 = arith.addf %103, %104 : vector<2x512xf32>
    %106 = vector.extract_strided_slice %105 {offsets = [0, 0], sizes = [2, 128], strides = [1, 1]} : vector<2x512xf32> to vector<2x128xf32>
    %107 = arith.negf %106 : vector<2x128xf32>
    %108 = math.exp %107 : vector<2x128xf32>
    %cst_29 = arith.constant 1.000000e+00 : f32
    %109 = vector.broadcast %cst_29 : f32 to vector<2x128xf32>
    %110 = arith.addf %109, %108 : vector<2x128xf32>
    %111 = arith.divf %109, %110 : vector<2x128xf32>
    %112 = vector.extract_strided_slice %105 {offsets = [0, 128], sizes = [2, 128], strides = [1, 1]} : vector<2x512xf32> to vector<2x128xf32>
    %113 = arith.negf %112 : vector<2x128xf32>
    %114 = math.exp %113 : vector<2x128xf32>
    %cst_30 = arith.constant 1.000000e+00 : f32
    %115 = vector.broadcast %cst_30 : f32 to vector<2x128xf32>
    %116 = arith.addf %115, %114 : vector<2x128xf32>
    %117 = arith.divf %115, %116 : vector<2x128xf32>
    %118 = vector.extract_strided_slice %105 {offsets = [0, 256], sizes = [2, 128], strides = [1, 1]} : vector<2x512xf32> to vector<2x128xf32>
    %119 = math.tanh %118 : vector<2x128xf32>
    %120 = vector.extract_strided_slice %105 {offsets = [0, 384], sizes = [2, 128], strides = [1, 1]} : vector<2x512xf32> to vector<2x128xf32>
    %121 = arith.negf %120 : vector<2x128xf32>
    %122 = math.exp %121 : vector<2x128xf32>
    %cst_31 = arith.constant 1.000000e+00 : f32
    %123 = vector.broadcast %cst_31 : f32 to vector<2x128xf32>
    %124 = arith.addf %123, %122 : vector<2x128xf32>
    %125 = arith.divf %123, %124 : vector<2x128xf32>
    %126 = arith.mulf %117, %100 : vector<2x128xf32>
    %127 = arith.mulf %111, %119 : vector<2x128xf32>
    %128 = arith.addf %126, %127 : vector<2x128xf32>
    %129 = math.tanh %128 : vector<2x128xf32>
    %130 = arith.mulf %125, %129 : vector<2x128xf32>
    %131 = vector.extract_strided_slice %15 {offsets = [8, 0], sizes = [2, 512], strides = [1, 1]} : vector<16x512xf32> to vector<2x512xf32>
    %cst_32 = arith.constant dense<0.000000e+00> : vector<2x512xf32>
    %132 = tpu.matmul %130, %16, %cst_32 {dimension_numbers = #tpu.dot_dimension_numbers<[1], [0], [0], [1], [0, 0, 1, 1], [], []>} : vector<2x128xf32>, vector<128x512xf32>, vector<2x512xf32> -> vector<2x512xf32>
    %133 = arith.addf %131, %132 : vector<2x512xf32>
    %134 = vector.extract_strided_slice %133 {offsets = [0, 0], sizes = [2, 128], strides = [1, 1]} : vector<2x512xf32> to vector<2x128xf32>
    %135 = arith.negf %134 : vector<2x128xf32>
    %136 = math.exp %135 : vector<2x128xf32>
    %cst_33 = arith.constant 1.000000e+00 : f32
    %137 = vector.broadcast %cst_33 : f32 to vector<2x128xf32>
    %138 = arith.addf %137, %136 : vector<2x128xf32>
    %139 = arith.divf %137, %138 : vector<2x128xf32>
    %140 = vector.extract_strided_slice %133 {offsets = [0, 128], sizes = [2, 128], strides = [1, 1]} : vector<2x512xf32> to vector<2x128xf32>
    %141 = arith.negf %140 : vector<2x128xf32>
    %142 = math.exp %141 : vector<2x128xf32>
    %cst_34 = arith.constant 1.000000e+00 : f32
    %143 = vector.broadcast %cst_34 : f32 to vector<2x128xf32>
    %144 = arith.addf %143, %142 : vector<2x128xf32>
    %145 = arith.divf %143, %144 : vector<2x128xf32>
    %146 = vector.extract_strided_slice %133 {offsets = [0, 256], sizes = [2, 128], strides = [1, 1]} : vector<2x512xf32> to vector<2x128xf32>
    %147 = math.tanh %146 : vector<2x128xf32>
    %148 = vector.extract_strided_slice %133 {offsets = [0, 384], sizes = [2, 128], strides = [1, 1]} : vector<2x512xf32> to vector<2x128xf32>
    %149 = arith.negf %148 : vector<2x128xf32>
    %150 = math.exp %149 : vector<2x128xf32>
    %cst_35 = arith.constant 1.000000e+00 : f32
    %151 = vector.broadcast %cst_35 : f32 to vector<2x128xf32>
    %152 = arith.addf %151, %150 : vector<2x128xf32>
    %153 = arith.divf %151, %152 : vector<2x128xf32>
    %154 = arith.mulf %145, %128 : vector<2x128xf32>
    %155 = arith.mulf %139, %147 : vector<2x128xf32>
    %156 = arith.addf %154, %155 : vector<2x128xf32>
    %157 = math.tanh %156 : vector<2x128xf32>
    %158 = arith.mulf %153, %157 : vector<2x128xf32>
    %159 = vector.extract_strided_slice %15 {offsets = [10, 0], sizes = [2, 512], strides = [1, 1]} : vector<16x512xf32> to vector<2x512xf32>
    %cst_36 = arith.constant dense<0.000000e+00> : vector<2x512xf32>
    %160 = tpu.matmul %158, %16, %cst_36 {dimension_numbers = #tpu.dot_dimension_numbers<[1], [0], [0], [1], [0, 0, 1, 1], [], []>} : vector<2x128xf32>, vector<128x512xf32>, vector<2x512xf32> -> vector<2x512xf32>
    %161 = arith.addf %159, %160 : vector<2x512xf32>
    %162 = vector.extract_strided_slice %161 {offsets = [0, 0], sizes = [2, 128], strides = [1, 1]} : vector<2x512xf32> to vector<2x128xf32>
    %163 = arith.negf %162 : vector<2x128xf32>
    %164 = math.exp %163 : vector<2x128xf32>
    %cst_37 = arith.constant 1.000000e+00 : f32
    %165 = vector.broadcast %cst_37 : f32 to vector<2x128xf32>
    %166 = arith.addf %165, %164 : vector<2x128xf32>
    %167 = arith.divf %165, %166 : vector<2x128xf32>
    %168 = vector.extract_strided_slice %161 {offsets = [0, 128], sizes = [2, 128], strides = [1, 1]} : vector<2x512xf32> to vector<2x128xf32>
    %169 = arith.negf %168 : vector<2x128xf32>
    %170 = math.exp %169 : vector<2x128xf32>
    %cst_38 = arith.constant 1.000000e+00 : f32
    %171 = vector.broadcast %cst_38 : f32 to vector<2x128xf32>
    %172 = arith.addf %171, %170 : vector<2x128xf32>
    %173 = arith.divf %171, %172 : vector<2x128xf32>
    %174 = vector.extract_strided_slice %161 {offsets = [0, 256], sizes = [2, 128], strides = [1, 1]} : vector<2x512xf32> to vector<2x128xf32>
    %175 = math.tanh %174 : vector<2x128xf32>
    %176 = vector.extract_strided_slice %161 {offsets = [0, 384], sizes = [2, 128], strides = [1, 1]} : vector<2x512xf32> to vector<2x128xf32>
    %177 = arith.negf %176 : vector<2x128xf32>
    %178 = math.exp %177 : vector<2x128xf32>
    %cst_39 = arith.constant 1.000000e+00 : f32
    %179 = vector.broadcast %cst_39 : f32 to vector<2x128xf32>
    %180 = arith.addf %179, %178 : vector<2x128xf32>
    %181 = arith.divf %179, %180 : vector<2x128xf32>
    %182 = arith.mulf %173, %156 : vector<2x128xf32>
    %183 = arith.mulf %167, %175 : vector<2x128xf32>
    %184 = arith.addf %182, %183 : vector<2x128xf32>
    %185 = math.tanh %184 : vector<2x128xf32>
    %186 = arith.mulf %181, %185 : vector<2x128xf32>
    %187 = vector.extract_strided_slice %15 {offsets = [12, 0], sizes = [2, 512], strides = [1, 1]} : vector<16x512xf32> to vector<2x512xf32>
    %cst_40 = arith.constant dense<0.000000e+00> : vector<2x512xf32>
    %188 = tpu.matmul %186, %16, %cst_40 {dimension_numbers = #tpu.dot_dimension_numbers<[1], [0], [0], [1], [0, 0, 1, 1], [], []>} : vector<2x128xf32>, vector<128x512xf32>, vector<2x512xf32> -> vector<2x512xf32>
    %189 = arith.addf %187, %188 : vector<2x512xf32>
    %190 = vector.extract_strided_slice %189 {offsets = [0, 0], sizes = [2, 128], strides = [1, 1]} : vector<2x512xf32> to vector<2x128xf32>
    %191 = arith.negf %190 : vector<2x128xf32>
    %192 = math.exp %191 : vector<2x128xf32>
    %cst_41 = arith.constant 1.000000e+00 : f32
    %193 = vector.broadcast %cst_41 : f32 to vector<2x128xf32>
    %194 = arith.addf %193, %192 : vector<2x128xf32>
    %195 = arith.divf %193, %194 : vector<2x128xf32>
    %196 = vector.extract_strided_slice %189 {offsets = [0, 128], sizes = [2, 128], strides = [1, 1]} : vector<2x512xf32> to vector<2x128xf32>
    %197 = arith.negf %196 : vector<2x128xf32>
    %198 = math.exp %197 : vector<2x128xf32>
    %cst_42 = arith.constant 1.000000e+00 : f32
    %199 = vector.broadcast %cst_42 : f32 to vector<2x128xf32>
    %200 = arith.addf %199, %198 : vector<2x128xf32>
    %201 = arith.divf %199, %200 : vector<2x128xf32>
    %202 = vector.extract_strided_slice %189 {offsets = [0, 256], sizes = [2, 128], strides = [1, 1]} : vector<2x512xf32> to vector<2x128xf32>
    %203 = math.tanh %202 : vector<2x128xf32>
    %204 = vector.extract_strided_slice %189 {offsets = [0, 384], sizes = [2, 128], strides = [1, 1]} : vector<2x512xf32> to vector<2x128xf32>
    %205 = arith.negf %204 : vector<2x128xf32>
    %206 = math.exp %205 : vector<2x128xf32>
    %cst_43 = arith.constant 1.000000e+00 : f32
    %207 = vector.broadcast %cst_43 : f32 to vector<2x128xf32>
    %208 = arith.addf %207, %206 : vector<2x128xf32>
    %209 = arith.divf %207, %208 : vector<2x128xf32>
    %210 = arith.mulf %201, %184 : vector<2x128xf32>
    %211 = arith.mulf %195, %203 : vector<2x128xf32>
    %212 = arith.addf %210, %211 : vector<2x128xf32>
    %213 = math.tanh %212 : vector<2x128xf32>
    %214 = arith.mulf %209, %213 : vector<2x128xf32>
    %215 = vector.extract_strided_slice %15 {offsets = [14, 0], sizes = [2, 512], strides = [1, 1]} : vector<16x512xf32> to vector<2x512xf32>
    %cst_44 = arith.constant dense<0.000000e+00> : vector<2x512xf32>
    %216 = tpu.matmul %214, %16, %cst_44 {dimension_numbers = #tpu.dot_dimension_numbers<[1], [0], [0], [1], [0, 0, 1, 1], [], []>} : vector<2x128xf32>, vector<128x512xf32>, vector<2x512xf32> -> vector<2x512xf32>
    %217 = arith.addf %215, %216 : vector<2x512xf32>
    %218 = vector.extract_strided_slice %217 {offsets = [0, 0], sizes = [2, 128], strides = [1, 1]} : vector<2x512xf32> to vector<2x128xf32>
    %219 = arith.negf %218 : vector<2x128xf32>
    %220 = math.exp %219 : vector<2x128xf32>
    %cst_45 = arith.constant 1.000000e+00 : f32
    %221 = vector.broadcast %cst_45 : f32 to vector<2x128xf32>
    %222 = arith.addf %221, %220 : vector<2x128xf32>
    %223 = arith.divf %221, %222 : vector<2x128xf32>
    %224 = vector.extract_strided_slice %217 {offsets = [0, 128], sizes = [2, 128], strides = [1, 1]} : vector<2x512xf32> to vector<2x128xf32>
    %225 = arith.negf %224 : vector<2x128xf32>
    %226 = math.exp %225 : vector<2x128xf32>
    %cst_46 = arith.constant 1.000000e+00 : f32
    %227 = vector.broadcast %cst_46 : f32 to vector<2x128xf32>
    %228 = arith.addf %227, %226 : vector<2x128xf32>
    %229 = arith.divf %227, %228 : vector<2x128xf32>
    %230 = vector.extract_strided_slice %217 {offsets = [0, 256], sizes = [2, 128], strides = [1, 1]} : vector<2x512xf32> to vector<2x128xf32>
    %231 = math.tanh %230 : vector<2x128xf32>
    %232 = vector.extract_strided_slice %217 {offsets = [0, 384], sizes = [2, 128], strides = [1, 1]} : vector<2x512xf32> to vector<2x128xf32>
    %233 = arith.negf %232 : vector<2x128xf32>
    %234 = math.exp %233 : vector<2x128xf32>
    %cst_47 = arith.constant 1.000000e+00 : f32
    %235 = vector.broadcast %cst_47 : f32 to vector<2x128xf32>
    %236 = arith.addf %235, %234 : vector<2x128xf32>
    %237 = arith.divf %235, %236 : vector<2x128xf32>
    %238 = arith.mulf %229, %212 : vector<2x128xf32>
    %239 = arith.mulf %223, %231 : vector<2x128xf32>
    %240 = arith.addf %238, %239 : vector<2x128xf32>
    %241 = math.tanh %240 : vector<2x128xf32>
    %242 = arith.mulf %237, %241 : vector<2x128xf32>
    %c0_48 = arith.constant 0 : index
    %c0_49 = arith.constant 0 : index
    %243 = vector.load %arg6[%c0_48, %c0_49] : memref<128x128xf32, #tpu.memory_space<vmem>>, vector<128x128xf32>
    %cst_50 = arith.constant dense<0.000000e+00> : vector<2x128xf32>
    %244 = tpu.matmul %242, %243, %cst_50 {dimension_numbers = #tpu.dot_dimension_numbers<[1], [0], [0], [1], [0, 0, 1, 1], [], []>} : vector<2x128xf32>, vector<128x128xf32>, vector<2x128xf32> -> vector<2x128xf32>
    %c0_51 = arith.constant 0 : index
    %c0_52 = arith.constant 0 : index
    %245 = vector.load %arg7[%c0_51, %c0_52] : memref<1x128xf32, #tpu.memory_space<vmem>>, vector<1x128xf32>
    %246 = vector.broadcast %245 : vector<1x128xf32> to vector<2x128xf32>
    %247 = arith.addf %244, %246 : vector<2x128xf32>
    %248 = tpu.iota {dimensions = array<i32: 1>} : vector<2x128xi32>
    %c3_i32 = arith.constant 3 : i32
    %249 = vector.broadcast %c3_i32 : i32 to vector<2x128xi32>
    %250 = arith.cmpi slt, %248, %249 : vector<2x128xi32>
    %cst_53 = arith.constant -1.000000e+30 : f32
    %251 = vector.broadcast %cst_53 : f32 to vector<2x128xf32>
    %252 = arith.select %250, %247, %251 : vector<2x128xi1>, vector<2x128xf32>
    %cst_54 = arith.constant dense<0xFF800000> : vector<2xf32>
    %253 = vector.multi_reduction <maximumf>, %252, %cst_54 [1] : vector<2x128xf32> to vector<2xf32>
    %254 = vector.shape_cast %253 : vector<2xf32> to vector<2x1xf32>
    %255 = vector.broadcast %254 : vector<2x1xf32> to vector<2x128xf32>
    %256 = arith.subf %252, %255 : vector<2x128xf32>
    %257 = math.exp %256 : vector<2x128xf32>
    %cst_55 = arith.constant dense<0.000000e+00> : vector<2xf32>
    %258 = vector.multi_reduction <add>, %257, %cst_55 [1] : vector<2x128xf32> to vector<2xf32>
    %259 = vector.shape_cast %258 : vector<2xf32> to vector<2x1xf32>
    %260 = vector.broadcast %259 : vector<2x1xf32> to vector<2x128xf32>
    %261 = arith.divf %257, %260 : vector<2x128xf32>
    %c3_i32_56 = arith.constant 3 : i32
    %262 = vector.broadcast %c3_i32_56 : i32 to vector<2x128xi32>
    %263 = arith.cmpi sge, %248, %262 : vector<2x128xi32>
    %c5_i32 = arith.constant 5 : i32
    %264 = vector.broadcast %c5_i32 : i32 to vector<2x128xi32>
    %265 = arith.cmpi slt, %248, %264 : vector<2x128xi32>
    %266 = arith.andi %263, %265 : vector<2x128xi1>
    %cst_57 = arith.constant -1.000000e+30 : f32
    %267 = vector.broadcast %cst_57 : f32 to vector<2x128xf32>
    %268 = arith.select %266, %247, %267 : vector<2x128xi1>, vector<2x128xf32>
    %cst_58 = arith.constant dense<0xFF800000> : vector<2xf32>
    %269 = vector.multi_reduction <maximumf>, %268, %cst_58 [1] : vector<2x128xf32> to vector<2xf32>
    %270 = vector.shape_cast %269 : vector<2xf32> to vector<2x1xf32>
    %271 = vector.broadcast %270 : vector<2x1xf32> to vector<2x128xf32>
    %272 = arith.subf %268, %271 : vector<2x128xf32>
    %273 = math.exp %272 : vector<2x128xf32>
    %cst_59 = arith.constant dense<0.000000e+00> : vector<2xf32>
    %274 = vector.multi_reduction <add>, %273, %cst_59 [1] : vector<2x128xf32> to vector<2xf32>
    %275 = vector.shape_cast %274 : vector<2xf32> to vector<2x1xf32>
    %276 = vector.broadcast %275 : vector<2x1xf32> to vector<2x128xf32>
    %277 = arith.divf %273, %276 : vector<2x128xf32>
    %278 = arith.addf %261, %277 : vector<2x128xf32>
    %c0_60 = arith.constant 0 : index
    %c0_61 = arith.constant 0 : index
    %279 = vector.load %arg8[%c0_60, %c0_61] : memref<2x128xf32, #tpu.memory_space<vmem>>, vector<2x128xf32>
    tpu.vector_store %arg8[%c0_60, %c0_61], %278 {strides = array<i32>} : memref<2x128xf32, #tpu.memory_space<vmem>>, vector<2x128xf32>,
    return
  }
}

</mosaic_0001>

<llo_original>
// kernel: maneuver_forward.1
$region0: #{maneuver_forward.1}
  #allocation0 [shape = 'u32[]', space=smem, size = 0x4, offset = 0x4, fixed_abs, tag = 'smem constant byte address 0x4 - core index']
  #allocation1 [shape = 'u32[144,128]{1,0:T(1,128)}', space=vmem, size = 0x12000, scoped, tag = 'internal scratch']
  %s0 = inlined_call_operand.vmem [shape: f32[16,16], index: 0, kind: input, shape index: {}]
  %s1 = inlined_call_operand.vmem [shape: f32[16,64], index: 1, kind: input, shape index: {}]
  %s2 = inlined_call_operand.vmem [shape: f32[1,64], index: 2, kind: input, shape index: {}]
  %s3 = inlined_call_operand.vmem [shape: f32[64,512], index: 3, kind: input, shape index: {}]
  %s4 = inlined_call_operand.vmem [shape: f32[128,512], index: 4, kind: input, shape index: {}]
  %s5 = inlined_call_operand.vmem [shape: f32[1,512], index: 5, kind: input, shape index: {}]
  %s6 = inlined_call_operand.vmem [shape: f32[128,128], index: 6, kind: input, shape index: {}]
  %s7 = inlined_call_operand.vmem [shape: f32[1,128], index: 7, kind: input, shape index: {}]
  %s8 = inlined_call_operand.vmem [shape: f32[2,128], index: 8, kind: output, shape index: {}]
  %s9 = sld [smem:[#allocation0]]
  $region42: #{maneuver_forward.1} parent=0
    _
  %s11 = ssub.s32 1, %s9
  %s12 = scalar_select 0, %s11, %s9
  // Predicated region
  $region2: #{maneuver_forward.1} parent=0 // pred_check
    _
  $region3: #{maneuver_forward.1} parent=0 // pred_check_branch
    %14 = sbr.rel (0) target = $region5
  $region4: #{maneuver_forward.1} parent=0 // pred_region
    _
  $region5: #{maneuver_forward.1} parent=0 // pred_fallthru
    _
  // Predicated region
  $region6: #{maneuver_forward.1} parent=0 // pred_check
    _
  $region7: #{maneuver_forward.1} parent=0 // pred_check_branch
    %16 = sbr.rel (0) target = $region9
  $region8: #{maneuver_forward.1} parent=0 // pred_region
    _
  $region9: #{maneuver_forward.1} parent=0 // pred_fallthru
    _
  // Predicated region
  $region10: #{maneuver_forward.1} parent=0 // pred_check
    _
  $region11: #{maneuver_forward.1} parent=0 // pred_check_branch
    %18 = sbr.rel (0) target = $region13
  $region12: #{maneuver_forward.1} parent=0 // pred_region
    _
  $region13: #{maneuver_forward.1} parent=0 // pred_fallthru
    _
  // Predicated region
  $region14: #{maneuver_forward.1} parent=0 // pred_check
    _
  $region15: #{maneuver_forward.1} parent=0 // pred_check_branch
    %20 = sbr.rel (0) target = $region17
  $region16: #{maneuver_forward.1} parent=0 // pred_region
    _
  $region17: #{maneuver_forward.1} parent=0 // pred_fallthru
    _
  // Predicated region
  $region18: #{maneuver_forward.1} parent=0 // pred_check
    _
  $region19: #{maneuver_forward.1} parent=0 // pred_check_branch
    %22 = sbr.rel (0) target = $region21
  $region20: #{maneuver_forward.1} parent=0 // pred_region
    _
  $region21: #{maneuver_forward.1} parent=0 // pred_fallthru
    _
  // Predicated region
  $region22: #{maneuver_forward.1} parent=0 // pred_check
    _
  $region23: #{maneuver_forward.1} parent=0 // pred_check_branch
    %24 = sbr.rel (0) target = $region25
  $region24: #{maneuver_forward.1} parent=0 // pred_region
    _
  $region25: #{maneuver_forward.1} parent=0 // pred_fallthru
    _
  // Predicated region
  $region26: #{maneuver_forward.1} parent=0 // pred_check
    _
  $region27: #{maneuver_forward.1} parent=0 // pred_check_branch
    %26 = sbr.rel (0) target = $region29
  $region28: #{maneuver_forward.1} parent=0 // pred_region
    _
  $region29: #{maneuver_forward.1} parent=0 // pred_fallthru
    _
  // Predicated region
  $region30: #{maneuver_forward.1} parent=0 // pred_check
    _
  $region31: #{maneuver_forward.1} parent=0 // pred_check_branch
    %28 = sbr.rel (0) target = $region33
  $region32: #{maneuver_forward.1} parent=0 // pred_region
    _
  $region33: #{maneuver_forward.1} parent=0 // pred_fallthru
    _
  %v29 = vld [vmem:[%s0] sm:$0xff]
  %v30 = vld [vmem:[%s0 + $0x8] sm:$0xff]
  %v31 = vld [vmem:[%s1] sm:$0xff]
  %v32 = vld [vmem:[%s1 + $0x8] sm:$0xff]
  %v33 = vld [vmem:[%s2] sm:$0x1]
  %v35 = vlaneseq
  %v36 = vshrl.u32 %v35, 7
  %v37 = vsub.s32 0, %v36
  %v38 = vrot.slane %v33, %v37
  %vm40 = vcmask 130048
  %v42 = vsel %vm40, %v29, 0
  %v45 = vsel %vm40, %v30, 0
  %47 = vmatprep.subr.mxu0 0.0
  %48 = vmatpush1.msra.mxu0 0.0
  %49 = vmatprep.subr.mxu0 0.0
  %50 = vmatpush1.msra.mxu0 0.0
  %51 = vmatprep.subr.mxu0 0.0
  %52 = vmatpush1.msra.mxu0 0.0
  %53 = vmatprep.subr.mxu0 0.0
  %54 = vmatpush1.msra.mxu0 0.0
  %55 = vmatprep.subr.mxu0 0.0
  %56 = vmatpush1.msra.mxu0 0.0
  %57 = vmatprep.subr.mxu0 0.0
  %58 = vmatpush1.msra.mxu0 0.0
  %59 = vmatprep.subr.mxu0 0.0
  %60 = vmatpush1.msra.mxu0 0.0
  %61 = vmatprep.subr.mxu0 0.0
  %62 = vmatpush1.msra.mxu0 0.0
  %63 = vmatprep.subr.mxu0 0.0
  %64 = vmatpush1.msra.mxu0 0.0
  %65 = vmatprep.subr.mxu0 0.0
  %66 = vmatpush1.msra.mxu0 0.0
  %67 = vmatprep.subr.mxu0 0.0
  %68 = vmatpush1.msra.mxu0 0.0
  %69 = vmatprep.subr.mxu0 0.0
  %70 = vmatpush1.msra.mxu0 0.0
  %71 = vmatprep.subr.mxu0 0.0
  %72 = vmatpush1.msra.mxu0 0.0
  %73 = vmatprep.subr.mxu0 0.0
  %74 = vmatpush1.msra.mxu0 0.0
  %75 = vmatprep.subr.mxu0 0.0
  %76 = vmatpush1.msra.mxu0 %v32
  %77 = vmatprep.subr.mxu0 0.0
  %78 = vmatpush1.msra.mxu0 %v31
  %79 = vmatprep.subr.mxu0 0.0
  %80 = vmatpush2.msra.mxu0 0.0
  %81 = vmatprep.subr.mxu0 0.0
  %82 = vmatpush2.msra.mxu0 0.0
  %83 = vmatprep.subr.mxu0 0.0
  %84 = vmatpush2.msra.mxu0 0.0
  %85 = vmatprep.subr.mxu0 0.0
  %86 = vmatpush2.msra.mxu0 0.0
  %87 = vmatprep.subr.mxu0 0.0
  %88 = vmatpush2.msra.mxu0 0.0
  %89 = vmatprep.subr.mxu0 0.0
  %90 = vmatpush2.msra.mxu0 0.0
  %91 = vmatprep.subr.mxu0 0.0
  %92 = vmatpush2.msra.mxu0 0.0
  %93 = vmatprep.subr.mxu0 0.0
  %94 = vmatpush2.msra.mxu0 0.0
  %95 = vmatprep.subr.mxu0 0.0
  %96 = vmatpush2.msra.mxu0 0.0
  %97 = vmatprep.subr.mxu0 0.0
  %98 = vmatpush2.msra.mxu0 0.0
  %99 = vmatprep.subr.mxu0 0.0
  %100 = vmatpush2.msra.mxu0 0.0
  %101 = vmatprep.subr.mxu0 0.0
  %102 = vmatpush2.msra.mxu0 0.0
  %103 = vmatprep.subr.mxu0 0.0
  %104 = vmatpush2.msra.mxu0 0.0
  %105 = vmatprep.subr.mxu0 0.0
  %106 = vmatpush2.msra.mxu0 0.0
  %107 = vmatprep.subr.mxu0 0.0
  %108 = vmatpush2.msra.mxu0 0.0
  %109 = vmatprep.subr.mxu0 0.0
  %110 = vmatpush2.msra.mxu0 0.0
  %111 = vmatprep.mubr.f32.mxu0 0.0
  %112 = vmatmul.mubr.f32.gmra.mxu0 %v42
  %v113 = vpop.f32.mrf.mxu0
  %v114 = vadd.f32 %v38, %v113
  %v115 = vpop.f32.mrf.mxu0
  %116 = vmatprep.mubr.f32.mxu0 0.0
  %117 = vmatmul.mubr.f32.gmra.mxu0 %v45
  %v118 = vpop.f32.mrf.mxu0
  %v119 = vadd.f32 %v38, %v118
  %v120 = vpop.f32.mrf.mxu0
  %121 = vdwg.mxu0
  %vm122 = vcmp.gt.f32.partialorder %v114, 0.0
  %vm123 = vcmp.gt.f32.partialorder %v119, 0.0
  %v124 = vmul.f32 %v114, 0.1
  %v125 = vmul.f32 %v119, 0.1
  %v126 = vsel %vm122, %v114, %v124
  %v127 = vsel %vm123, %v119, %v125
  %v128 = vld [vmem:[%s3] sm:$0xff]
  %v129 = vld [vmem:[%s3 + $0x8] sm:$0xff]
  %v130 = vld [vmem:[%s3 + $0x10] sm:$0xff]
  %v131 = vld [vmem:[%s3 + $0x18] sm:$0xff]
  %v132 = vld [vmem:[%s3 + $0x20] sm:$0xff]
  %v133 = vld [vmem:[%s3 + $0x28] sm:$0xff]
  %v134 = vld [vmem:[%s3 + $0x30] sm:$0xff]
  %v135 = vld [vmem:[%s3 + $0x38] sm:$0xff]
  %v136 = vld [vmem:[%s3 + $0x40] sm:$0xff]
  %v137 = vld [vmem:[%s3 + $0x48] sm:$0xff]
  %v138 = vld [vmem:[%s3 + $0x50] sm:$0xff]
  %v139 = vld [vmem:[%s3 + $0x58] sm:$0xff]
  %v140 = vld [vmem:[%s3 + $0x60] sm:$0xff]
  %v141 = vld [vmem:[%s3 + $0x68] sm:$0xff]
  %v142 = vld [vmem:[%s3 + $0x70] sm:$0xff]
  %v143 = vld [vmem:[%s3 + $0x78] sm:$0xff]
  %v144 = vld [vmem:[%s3 + $0x80] sm:$0xff]
  %v145 = vld [vmem:[%s3 + $0x88] sm:$0xff]
  %v146 = vld [vmem:[%s3 + $0x90] sm:$0xff]
  %v147 = vld [vmem:[%s3 + $0x98] sm:$0xff]
  %v148 = vld [vmem:[%s3 + $0xa0] sm:$0xff]
  %v149 = vld [vmem:[%s3 + $0xa8] sm:$0xff]
  %v150 = vld [vmem:[%s3 + $0xb0] sm:$0xff]
  %v151 = vld [vmem:[%s3 + $0xb8] sm:$0xff]
  %v152 = vld [vmem:[%s3 + $0xc0] sm:$0xff]
  %v153 = vld [vmem:[%s3 + $0xc8] sm:$0xff]
  %v154 = vld [vmem:[%s3 + $0xd0] sm:$0xff]
  %v155 = vld [vmem:[%s3 + $0xd8] sm:$0xff]
  %v156 = vld [vmem:[%s3 + $0xe0] sm:$0xff]
  %v157 = vld [vmem:[%s3 + $0xe8] sm:$0xff]
  %v158 = vld [vmem:[%s3 + $0xf0] sm:$0xff]
  %v159 = vld [vmem:[%s3 + $0xf8] sm:$0xff]
  %v160 = vld [vmem:[%s5] sm:$0xf]
  %v162 = vlaneseq
  %v163 = vshrl.u32 %v162, 7
  %v164 = vsub.s32 0, %v163
  %v165 = vrot.slane %v160, %v164
  %v166 = vlaneseq
  %v167 = vshrl.u32 %v166, 7
  %v168 = vsub.s32 1, %v167
  %v169 = vrot.slane %v160, %v168
  %v170 = vlaneseq
  %v171 = vshrl.u32 %v170, 7
  %v172 = vsub.s32 2, %v171
  %v173 = vrot.slane %v160, %v172
  %v174 = vlaneseq
  %v175 = vshrl.u32 %v174, 7
  %v176 = vsub.s32 3, %v175
  %v177 = vrot.slane %v160, %v176
  %vm182 = vcmask 523264
  %v184 = vsel %vm182, %v126, 0
  %v187 = vsel %vm182, %v127, 0
  %189 = vmatprep.subr.mxu0 0.0
  %190 = vmatpush1.msra.mxu0 0.0
  %191 = vmatprep.subr.mxu0 0.0
  %192 = vmatpush1.msra.mxu0 0.0
  %193 = vmatprep.subr.mxu0 0.0
  %194 = vmatpush1.msra.mxu0 0.0
  %195 = vmatprep.subr.mxu0 0.0
  %196 = vmatpush1.msra.mxu0 0.0
  %197 = vmatprep.subr.mxu0 0.0
  %198 = vmatpush1.msra.mxu0 0.0
  %199 = vmatprep.subr.mxu0 0.0
  %200 = vmatpush1.msra.mxu0 0.0
  %201 = vmatprep.subr.mxu0 0.0
  %202 = vmatpush1.msra.mxu0 0.0
  %203 = vmatprep.subr.mxu0 0.0
  %204 = vmatpush1.msra.mxu0 0.0
  %205 = vmatprep.subr.mxu0 %v157
  %206 = vmatpush1.msra.mxu0 %v156
  %207 = vmatprep.subr.mxu0 %v153
  %208 = vmatpush1.msra.mxu0 %v152
  %209 = vmatprep.subr.mxu0 %v149
  %210 = vmatpush1.msra.mxu0 %v148
  %211 = vmatprep.subr.mxu0 %v145
  %212 = vmatpush1.msra.mxu0 %v144
  %213 = vmatprep.subr.mxu0 %v141
  %214 = vmatpush1.msra.mxu0 %v140
  %215 = vmatprep.subr.mxu0 %v137
  %216 = vmatpush1.msra.mxu0 %v136
  %217 = vmatprep.subr.mxu0 %v133
  %218 = vmatpush1.msra.mxu0 %v132
  %219 = vmatprep.subr.mxu0 %v129
  %220 = vmatpush1.msra.mxu0 %v128
  %221 = vmatprep.subr.mxu0 0.0
  %222 = vmatpush2.msra.mxu0 0.0
  %223 = vmatprep.subr.mxu0 0.0
  %224 = vmatpush2.msra.mxu0 0.0
  %225 = vmatprep.subr.mxu0 0.0
  %226 = vmatpush2.msra.mxu0 0.0
  %227 = vmatprep.subr.mxu0 0.0
  %228 = vmatpush2.msra.mxu0 0.0
  %229 = vmatprep.subr.mxu0 0.0
  %230 = vmatpush2.msra.mxu0 0.0
  %231 = vmatprep.subr.mxu0 0.0
  %232 = vmatpush2.msra.mxu0 0.0
  %233 = vmatprep.subr.mxu0 0.0
  %234 = vmatpush2.msra.mxu0 0.0
  %235 = vmatprep.subr.mxu0 0.0
  %236 = vmatpush2.msra.mxu0 0.0
  %237 = vmatprep.subr.mxu0 0.0
  %238 = vmatpush2.msra.mxu0 0.0
  %239 = vmatprep.subr.mxu0 0.0
  %240 = vmatpush2.msra.mxu0 0.0
  %241 = vmatprep.subr.mxu0 0.0
  %242 = vmatpush2.msra.mxu0 0.0
  %243 = vmatprep.subr.mxu0 0.0
  %244 = vmatpush2.msra.mxu0 0.0
  %245 = vmatprep.subr.mxu0 0.0
  %246 = vmatpush2.msra.mxu0 0.0
  %247 = vmatprep.subr.mxu0 0.0
  %248 = vmatpush2.msra.mxu0 0.0
  %249 = vmatprep.subr.mxu0 0.0
  %250 = vmatpush2.msra.mxu0 0.0
  %251 = vmatprep.subr.mxu0 0.0
  %252 = vmatpush2.msra.mxu0 0.0
  %253 = vmatprep.mubr.f32.mxu0 0.0
  %254 = vmatmul.mubr.f32.gmra.mxu0 %v184
  %v255 = vpop.f32.mrf.mxu0
  %v256 = vadd.f32 %v165, %v255
  %v257 = vpop.f32.mrf.mxu0
  %v258 = vadd.f32 %v169, %v257
  %259 = vmatprep.mubr.f32.mxu0 0.0
  %260 = vmatmul.mubr.f32.gmra.mxu0 %v187
  %v261 = vpop.f32.mrf.mxu0
  %v262 = vadd.f32 %v165, %v261
  %v263 = vpop.f32.mrf.mxu0
  %v264 = vadd.f32 %v169, %v263
  %265 = vdwg.mxu0
  %266 = vmatprep.subr.mxu0 0.0
  %267 = vmatpush1.msra.mxu0 0.0
  %268 = vmatprep.subr.mxu0 0.0
  %269 = vmatpush1.msra.mxu0 0.0
  %270 = vmatprep.subr.mxu0 0.0
  %271 = vmatpush1.msra.mxu0 0.0
  %272 = vmatprep.subr.mxu0 0.0
  %273 = vmatpush1.msra.mxu0 0.0
  %274 = vmatprep.subr.mxu0 0.0
  %275 = vmatpush1.msra.mxu0 0.0
  %276 = vmatprep.subr.mxu0 0.0
  %277 = vmatpush1.msra.mxu0 0.0
  %278 = vmatprep.subr.mxu0 0.0
  %279 = vmatpush1.msra.mxu0 0.0
  %280 = vmatprep.subr.mxu0 0.0
  %281 = vmatpush1.msra.mxu0 0.0
  %282 = vmatprep.subr.mxu0 %v159
  %283 = vmatpush1.msra.mxu0 %v158
  %284 = vmatprep.subr.mxu0 %v155
  %285 = vmatpush1.msra.mxu0 %v154
  %286 = vmatprep.subr.mxu0 %v151
  %287 = vmatpush1.msra.mxu0 %v150
  %288 = vmatprep.subr.mxu0 %v147
  %289 = vmatpush1.msra.mxu0 %v146
  %290 = vmatprep.subr.mxu0 %v143
  %291 = vmatpush1.msra.mxu0 %v142
  %292 = vmatprep.subr.mxu0 %v139
  %293 = vmatpush1.msra.mxu0 %v138
  %294 = vmatprep.subr.mxu0 %v135
  %295 = vmatpush1.msra.mxu0 %v134
  %296 = vmatprep.subr.mxu0 %v131
  %297 = vmatpush1.msra.mxu0 %v130
  %298 = vmatprep.subr.mxu0 0.0
  %299 = vmatpush2.msra.mxu0 0.0
  %300 = vmatprep.subr.mxu0 0.0
  %301 = vmatpush2.msra.mxu0 0.0
  %302 = vmatprep.subr.mxu0 0.0
  %303 = vmatpush2.msra.mxu0 0.0
  %304 = vmatprep.subr.mxu0 0.0
  %305 = vmatpush2.msra.mxu0 0.0
  %306 = vmatprep.subr.mxu0 0.0
  %307 = vmatpush2.msra.mxu0 0.0
  %308 = vmatprep.subr.mxu0 0.0
  %309 = vmatpush2.msra.mxu0 0.0
  %310 = vmatprep.subr.mxu0 0.0
  %311 = vmatpush2.msra.mxu0 0.0
  %312 = vmatprep.subr.mxu0 0.0
  %313 = vmatpush2.msra.mxu0 0.0
  %314 = vmatprep.subr.mxu0 0.0
  %315 = vmatpush2.msra.mxu0 0.0
  %316 = vmatprep.subr.mxu0 0.0
  %317 = vmatpush2.msra.mxu0 0.0
  %318 = vmatprep.subr.mxu0 0.0
  %319 = vmatpush2.msra.mxu0 0.0
  %320 = vmatprep.subr.mxu0 0.0
  %321 = vmatpush2.msra.mxu0 0.0
  %322 = vmatprep.subr.mxu0 0.0
  %323 = vmatpush2.msra.mxu0 0.0
  %324 = vmatprep.subr.mxu0 0.0
  %325 = vmatpush2.msra.mxu0 0.0
  %326 = vmatprep.subr.mxu0 0.0
  %327 = vmatpush2.msra.mxu0 0.0
  %328 = vmatprep.subr.mxu0 0.0
  %329 = vmatpush2.msra.mxu0 0.0
  %330 = vmatprep.mubr.f32.mxu0 0.0
  %331 = vmatmul.mubr.f32.gmra.mxu0 %v184
  %v332 = vpop.f32.mrf.mxu0
  %v333 = vadd.f32 %v173, %v332
  %v334 = vpop.f32.mrf.mxu0
  %v335 = vadd.f32 %v177, %v334
  %336 = vmatprep.mubr.f32.mxu0 0.0
  %337 = vmatmul.mubr.f32.gmra.mxu0 %v187
  %v338 = vpop.f32.mrf.mxu0
  %v339 = vadd.f32 %v173, %v338
  %v340 = vpop.f32.mrf.mxu0
  %v341 = vadd.f32 %v177, %v340
  %342 = vdwg.mxu0
  %v343 = vld [vmem:[%s4] sm:$0xff]
  %v344 = vld [vmem:[%s4 + $0x8] sm:$0xff]
  %v345 = vld [vmem:[%s4 + $0x10] sm:$0xff]
  %v346 = vld [vmem:[%s4 + $0x18] sm:$0xff]
  %v347 = vld [vmem:[%s4 + $0x20] sm:$0xff]
  %v348 = vld [vmem:[%s4 + $0x28] sm:$0xff]
  %v349 = vld [vmem:[%s4 + $0x30] sm:$0xff]
  %v350 = vld [vmem:[%s4 + $0x38] sm:$0xff]
  %v351 = vld [vmem:[%s4 + $0x40] sm:$0xff]
  %v352 = vld [vmem:[%s4 + $0x48] sm:$0xff]
  %v353 = vld [vmem:[%s4 + $0x50] sm:$0xff]
  %v354 = vld [vmem:[%s4 + $0x58] sm:$0xff]
  %v355 = vld [vmem:[%s4 + $0x60] sm:$0xff]
  %v356 = vld [vmem:[%s4 + $0x68] sm:$0xff]
  %v357 = vld [vmem:[%s4 + $0x70] sm:$0xff]
  %v358 = vld [vmem:[%s4 + $0x78] sm:$0xff]
  %v359 = vld [vmem:[%s4 + $0x80] sm:$0xff]
  %v360 = vld [vmem:[%s4 + $0x88] sm:$0xff]
  %v361 = vld [vmem:[%s4 + $0x90] sm:$0xff]
  %v362 = vld [vmem:[%s4 + $0x98] sm:$0xff]
  %v363 = vld [vmem:[%s4 + $0xa0] sm:$0xff]
  %v364 = vld [vmem:[%s4 + $0xa8] sm:$0xff]
  %v365 = vld [vmem:[%s4 + $0xb0] sm:$0xff]
  %v366 = vld [vmem:[%s4 + $0xb8] sm:$0xff]
  %v367 = vld [vmem:[%s4 + $0xc0] sm:$0xff]
  %v368 = vld [vmem:[%s4 + $0xc8] sm:$0xff]
  %v369 = vld [vmem:[%s4 + $0xd0] sm:$0xff]
  %v370 = vld [vmem:[%s4 + $0xd8] sm:$0xff]
  %v371 = vld [vmem:[%s4 + $0xe0] sm:$0xff]
  %v372 = vld [vmem:[%s4 + $0xe8] sm:$0xff]
  %v373 = vld [vmem:[%s4 + $0xf0] sm:$0xff]
  %v374 = vld [vmem:[%s4 + $0xf8] sm:$0xff]
  %v375 = vld [vmem:[%s4 + $0x100] sm:$0xff]
  %v376 = vld [vmem:[%s4 + $0x108] sm:$0xff]
  %v377 = vld [vmem:[%s4 + $0x110] sm:$0xff]
  %v378 = vld [vmem:[%s4 + $0x118] sm:$0xff]
  %v379 = vld [vmem:[%s4 + $0x120] sm:$0xff]
  %v380 = vld [vmem:[%s4 + $0x128] sm:$0xff]
  %v381 = vld [vmem:[%s4 + $0x130] sm:$0xff]
  %v382 = vld [vmem:[%s4 + $0x138] sm:$0xff]
  %v383 = vld [vmem:[%s4 + $0x140] sm:$0xff]
  %v384 = vld [vmem:[%s4 + $0x148] sm:$0xff]
  %v385 = vld [vmem:[%s4 + $0x150] sm:$0xff]
  %v386 = vld [vmem:[%s4 + $0x158] sm:$0xff]
  %v387 = vld [vmem:[%s4 + $0x160] sm:$0xff]
  %v388 = vld [vmem:[%s4 + $0x168] sm:$0xff]
  %v389 = vld [vmem:[%s4 + $0x170] sm:$0xff]
  %v390 = vld [vmem:[%s4 + $0x178] sm:$0xff]
  %v391 = vld [vmem:[%s4 + $0x180] sm:$0xff]
  %v392 = vld [vmem:[%s4 + $0x188] sm:$0xff]
  %v393 = vld [vmem:[%s4 + $0x190] sm:$0xff]
  %v394 = vld [vmem:[%s4 + $0x198] sm:$0xff]
  %v395 = vld [vmem:[%s4 + $0x1a0] sm:$0xff]
  %v396 = vld [vmem:[%s4 + $0x1a8] sm:$0xff]
  %v397 = vld [vmem:[%s4 + $0x1b0] sm:$0xff]
  %v398 = vld [vmem:[%s4 + $0x1b8] sm:$0xff]
  %v399 = vld [vmem:[%s4 + $0x1c0] sm:$0xff]
  %v400 = vld [vmem:[%s4 + $0x1c8] sm:$0xff]
  %v401 = vld [vmem:[%s4 + $0x1d0] sm:$0xff]
  %v402 = vld [vmem:[%s4 + $0x1d8] sm:$0xff]
  %v403 = vld [vmem:[%s4 + $0x1e0] sm:$0xff]
  %v404 = vld [vmem:[%s4 + $0x1e8] sm:$0xff]
  %v405 = vld [vmem:[%s4 + $0x1f0] sm:$0xff]
  %v406 = vld [vmem:[%s4 + $0x1f8] sm:$0xff]
  %407 = vmatprep.subr.mxu0 %v404
  %408 = vmatpush1.msra.mxu0 %v403
  %409 = vmatprep.subr.mxu0 %v400
  %410 = vmatpush1.msra.mxu0 %v399
  %411 = vmatprep.subr.mxu0 %v396
  %412 = vmatpush1.msra.mxu0 %v395
  %413 = vmatprep.subr.mxu0 %v392
  %414 = vmatpush1.msra.mxu0 %v391
  %415 = vmatprep.subr.mxu0 %v388
  %416 = vmatpush1.msra.mxu0 %v387
  %417 = vmatprep.subr.mxu0 %v384
  %418 = vmatpush1.msra.mxu0 %v383
  %419 = vmatprep.subr.mxu0 %v380
  %420 = vmatpush1.msra.mxu0 %v379
  %421 = vmatprep.subr.mxu0 %v376
  %422 = vmatpush1.msra.mxu0 %v375
  %423 = vmatprep.subr.mxu0 %v372
  %424 = vmatpush1.msra.mxu0 %v371
  %425 = vmatprep.subr.mxu0 %v368
  %426 = vmatpush1.msra.mxu0 %v367
  %427 = vmatprep.subr.mxu0 %v364
  %428 = vmatpush1.msra.mxu0 %v363
  %429 = vmatprep.subr.mxu0 %v360
  %430 = vmatpush1.msra.mxu0 %v359
  %431 = vmatprep.subr.mxu0 %v356
  %432 = vmatpush1.msra.mxu0 %v355
  %433 = vmatprep.subr.mxu0 %v352
  %434 = vmatpush1.msra.mxu0 %v351
  %435 = vmatprep.subr.mxu0 %v348
  %436 = vmatpush1.msra.mxu0 %v347
  %437 = vmatprep.subr.mxu0 %v344
  %438 = vmatpush1.msra.mxu0 %v343
  %439 = vmatprep.subr.mxu0 0.0
  %440 = vmatpush2.msra.mxu0 0.0
  %441 = vmatprep.subr.mxu0 0.0
  %442 = vmatpush2.msra.mxu0 0.0
  %443 = vmatprep.subr.mxu0 0.0
  %444 = vmatpush2.msra.mxu0 0.0
  %445 = vmatprep.subr.mxu0 0.0
  %446 = vmatpush2.msra.mxu0 0.0
  %447 = vmatprep.subr.mxu0 0.0
  %448 = vmatpush2.msra.mxu0 0.0
  %449 = vmatprep.subr.mxu0 0.0
  %450 = vmatpush2.msra.mxu0 0.0
  %451 = vmatprep.subr.mxu0 0.0
  %452 = vmatpush2.msra.mxu0 0.0
  %453 = vmatprep.subr.mxu0 0.0
  %454 = vmatpush2.msra.mxu0 0.0
  %455 = vmatprep.subr.mxu0 0.0
  %456 = vmatpush2.msra.mxu0 0.0
  %457 = vmatprep.subr.mxu0 0.0
  %458 = vmatpush2.msra.mxu0 0.0
  %459 = vmatprep.subr.mxu0 0.0
  %460 = vmatpush2.msra.mxu0 0.0
  %461 = vmatprep.subr.mxu0 0.0
  %462 = vmatpush2.msra.mxu0 0.0
  %463 = vmatprep.subr.mxu0 0.0
  %464 = vmatpush2.msra.mxu0 0.0
  %465 = vmatprep.subr.mxu0 0.0
  %466 = vmatpush2.msra.mxu0 0.0
  %467 = vmatprep.subr.mxu0 0.0
  %468 = vmatpush2.msra.mxu0 0.0
  %469 = vmatprep.subr.mxu0 0.0
  %470 = vmatpush2.msra.mxu0 0.0
  %471 = vmatprep.mubr.f32.mxu0 0.0
  %472 = vmatmul.mubr.f32.gmra.mxu0 0.0
  %v473 = vpop.f32.mrf.mxu0
  %v474 = vadd.f32 0.0, %v473
  %v475 = vpop.f32.mrf.mxu0
  %v476 = vadd.f32 0.0, %v475
  %477 = vdwg.mxu0
  %478 = vmatprep.subr.mxu0 %v406
  %479 = vmatpush1.msra.mxu0 %v405
  %480 = vmatprep.subr.mxu0 %v402
  %481 = vmatpush1.msra.mxu0 %v401
  %482 = vmatprep.subr.mxu0 %v398
  %483 = vmatpush1.msra.mxu0 %v397
  %484 = vmatprep.subr.mxu0 %v394
  %485 = vmatpush1.msra.mxu0 %v393
  %486 = vmatprep.subr.mxu0 %v390
  %487 = vmatpush1.msra.mxu0 %v389
  %488 = vmatprep.subr.mxu0 %v386
  %489 = vmatpush1.msra.mxu0 %v385
  %490 = vmatprep.subr.mxu0 %v382
  %491 = vmatpush1.msra.mxu0 %v381
  %492 = vmatprep.subr.mxu0 %v378
  %493 = vmatpush1.msra.mxu0 %v377
  %494 = vmatprep.subr.mxu0 %v374
  %495 = vmatpush1.msra.mxu0 %v373
  %496 = vmatprep.subr.mxu0 %v370
  %497 = vmatpush1.msra.mxu0 %v369
  %498 = vmatprep.subr.mxu0 %v366
  %499 = vmatpush1.msra.mxu0 %v365
  %500 = vmatprep.subr.mxu0 %v362
  %501 = vmatpush1.msra.mxu0 %v361
  %502 = vmatprep.subr.mxu0 %v358
  %503 = vmatpush1.msra.mxu0 %v357
  %504 = vmatprep.subr.mxu0 %v354
  %505 = vmatpush1.msra.mxu0 %v353
  %506 = vmatprep.subr.mxu0 %v350
  %507 = vmatpush1.msra.mxu0 %v349
  %508 = vmatprep.subr.mxu0 %v346
  %509 = vmatpush1.msra.mxu0 %v345
  %510 = vmatprep.subr.mxu0 0.0
  %511 = vmatpush2.msra.mxu0 0.0
  %512 = vmatprep.subr.mxu0 0.0
  %513 = vmatpush2.msra.mxu0 0.0
  %514 = vmatprep.subr.mxu0 0.0
  %515 = vmatpush2.msra.mxu0 0.0
  %516 = vmatprep.subr.mxu0 0.0
  %517 = vmatpush2.msra.mxu0 0.0
  %518 = vmatprep.subr.mxu0 0.0
  %519 = vmatpush2.msra.mxu0 0.0
  %520 = vmatprep.subr.mxu0 0.0
  %521 = vmatpush2.msra.mxu0 0.0
  %522 = vmatprep.subr.mxu0 0.0
  %523 = vmatpush2.msra.mxu0 0.0
  %524 = vmatprep.subr.mxu0 0.0
  %525 = vmatpush2.msra.mxu0 0.0
  %526 = vmatprep.subr.mxu0 0.0
  %527 = vmatpush2.msra.mxu0 0.0
  %528 = vmatprep.subr.mxu0 0.0
  %529 = vmatpush2.msra.mxu0 0.0
  %530 = vmatprep.subr.mxu0 0.0
  %531 = vmatpush2.msra.mxu0 0.0
  %532 = vmatprep.subr.mxu0 0.0
  %533 = vmatpush2.msra.mxu0 0.0
  %534 = vmatprep.subr.mxu0 0.0
  %535 = vmatpush2.msra.mxu0 0.0
  %536 = vmatprep.subr.mxu0 0.0
  %537 = vmatpush2.msra.mxu0 0.0
  %538 = vmatprep.subr.mxu0 0.0
  %539 = vmatpush2.msra.mxu0 0.0
  %540 = vmatprep.subr.mxu0 0.0
  %541 = vmatpush2.msra.mxu0 0.0
  %542 = vmatprep.mubr.f32.mxu0 0.0
  %543 = vmatmul.mubr.f32.gmra.mxu0 0.0
  %v544 = vpop.f32.mrf.mxu0
  %v545 = vadd.f32 0.0, %v544
  %v546 = vpop.f32.mrf.mxu0
  %v547 = vadd.f32 0.0, %v546
  %548 = vdwg.mxu0
  %v549 = vadd.f32 %v256, %v474
  %v550 = vadd.f32 %v258, %v476
  %v551 = vadd.f32 %v333, %v545
  %v552 = vadd.f32 %v335, %v547
  %v553 = vxor.u32 %v549, 2147483648
  %v554 = vmul.f32 %v553, 1.442695
  %v555 = vpow.pop %v554
  %v556 = vadd.f32 %v555, 1.0
  %v557 = vrcp.pop %v556
  %v558 = vmul.f32 1.0, %v557
  %v559 = vxor.u32 %v550, 2147483648
  %v560 = vmul.f32 %v559, 1.442695
  %v561 = vpow.pop %v560
  %v562 = vadd.f32 %v561, 1.0
  %v563 = vrcp.pop %v562
  %v564 = vmul.f32 1.0, %v563
  %v565 = vtanh.pop %v551
  %v566 = vxor.u32 %v552, 2147483648
  %v567 = vmul.f32 %v566, 1.442695
  %v568 = vpow.pop %v567
  %v569 = vadd.f32 %v568, 1.0
  %v570 = vrcp.pop %v569
  %v571 = vmul.f32 1.0, %v570
  %v572 = vmul.f32 %v564, 0.0
  %v573 = vmul.f32 %v558, %v565
  %v574 = vadd.f32 %v572, %v573
  %v575 = vtanh.pop %v574
  %v576 = vmul.f32 %v571, %v575
  %577 = vmatprep.subr.mxu0 %v404
  %578 = vmatpush1.msra.mxu0 %v403
  %579 = vmatprep.subr.mxu0 %v400
  %580 = vmatpush1.msra.mxu0 %v399
  %581 = vmatprep.subr.mxu0 %v396
  %582 = vmatpush1.msra.mxu0 %v395
  %583 = vmatprep.subr.mxu0 %v392
  %584 = vmatpush1.msra.mxu0 %v391
  %585 = vmatprep.subr.mxu0 %v388
  %586 = vmatpush1.msra.mxu0 %v387
  %587 = vmatprep.subr.mxu0 %v384
  %588 = vmatpush1.msra.mxu0 %v383
  %589 = vmatprep.subr.mxu0 %v380
  %590 = vmatpush1.msra.mxu0 %v379
  %591 = vmatprep.subr.mxu0 %v376
  %592 = vmatpush1.msra.mxu0 %v375
  %593 = vmatprep.subr.mxu0 %v372
  %594 = vmatpush1.msra.mxu0 %v371
  %595 = vmatprep.subr.mxu0 %v368
  %596 = vmatpush1.msra.mxu0 %v367
  %597 = vmatprep.subr.mxu0 %v364
  %598 = vmatpush1.msra.mxu0 %v363
  %599 = vmatprep.subr.mxu0 %v360
  %600 = vmatpush1.msra.mxu0 %v359
  %601 = vmatprep.subr.mxu0 %v356
  %602 = vmatpush1.msra.mxu0 %v355
  %603 = vmatprep.subr.mxu0 %v352
  %604 = vmatpush1.msra.mxu0 %v351
  %605 = vmatprep.subr.mxu0 %v348
  %606 = vmatpush1.msra.mxu0 %v347
  %607 = vmatprep.subr.mxu0 %v344
  %608 = vmatpush1.msra.mxu0 %v343
  %609 = vmatprep.subr.mxu0 0.0
  %610 = vmatpush2.msra.mxu0 0.0
  %611 = vmatprep.subr.mxu0 0.0
  %612 = vmatpush2.msra.mxu0 0.0
  %613 = vmatprep.subr.mxu0 0.0
  %614 = vmatpush2.msra.mxu0 0.0
  %615 = vmatprep.subr.mxu0 0.0
  %616 = vmatpush2.msra.mxu0 0.0
  %617 = vmatprep.subr.mxu0 0.0
  %618 = vmatpush2.msra.mxu0 0.0
  %619 = vmatprep.subr.mxu0 0.0
  %620 = vmatpush2.msra.mxu0 0.0
  %621 = vmatprep.subr.mxu0 0.0
  %622 = vmatpush2.msra.mxu0 0.0
  %623 = vmatprep.subr.mxu0 0.0
  %624 = vmatpush2.msra.mxu0 0.0
  %625 = vmatprep.subr.mxu0 0.0
  %626 = vmatpush2.msra.mxu0 0.0
  %627 = vmatprep.subr.mxu0 0.0
  %628 = vmatpush2.msra.mxu0 0.0
  %629 = vmatprep.subr.mxu0 0.0
  %630 = vmatpush2.msra.mxu0 0.0
  %631 = vmatprep.subr.mxu0 0.0
  %632 = vmatpush2.msra.mxu0 0.0
  %633 = vmatprep.subr.mxu0 0.0
  %634 = vmatpush2.msra.mxu0 0.0
  %635 = vmatprep.subr.mxu0 0.0
  %636 = vmatpush2.msra.mxu0 0.0
  %637 = vmatprep.subr.mxu0 0.0
  %638 = vmatpush2.msra.mxu0 0.0
  %639 = vmatprep.subr.mxu0 0.0
  %640 = vmatpush2.msra.mxu0 0.0
  %641 = vmatprep.mubr.f32.mxu0 0.0
  %642 = vmatmul.mubr.f32.gmra.mxu0 %v576
  %v643 = vpop.f32.mrf.mxu0
  %v644 = vadd.f32 0.0, %v643
  %v645 = vpop.f32.mrf.mxu0
  %v646 = vadd.f32 0.0, %v645
  %647 = vdwg.mxu0
  %648 = vmatprep.subr.mxu0 %v406
  %649 = vmatpush1.msra.mxu0 %v405
  %650 = vmatprep.subr.mxu0 %v402
  %651 = vmatpush1.msra.mxu0 %v401
  %652 = vmatprep.subr.mxu0 %v398
  %653 = vmatpush1.msra.mxu0 %v397
  %654 = vmatprep.subr.mxu0 %v394
  %655 = vmatpush1.msra.mxu0 %v393
  %656 = vmatprep.subr.mxu0 %v390
  %657 = vmatpush1.msra.mxu0 %v389
  %658 = vmatprep.subr.mxu0 %v386
  %659 = vmatpush1.msra.mxu0 %v385
  %660 = vmatprep.subr.mxu0 %v382
  %661 = vmatpush1.msra.mxu0 %v381
  %662 = vmatprep.subr.mxu0 %v378
  %663 = vmatpush1.msra.mxu0 %v377
  %664 = vmatprep.subr.mxu0 %v374
  %665 = vmatpush1.msra.mxu0 %v373
  %666 = vmatprep.subr.mxu0 %v370
  %667 = vmatpush1.msra.mxu0 %v369
  %668 = vmatprep.subr.mxu0 %v366
  %669 = vmatpush1.msra.mxu0 %v365
  %670 = vmatprep.subr.mxu0 %v362
  %671 = vmatpush1.msra.mxu0 %v361
  %672 = vmatprep.subr.mxu0 %v358
  %673 = vmatpush1.msra.mxu0 %v357
  %674 = vmatprep.subr.mxu0 %v354
  %675 = vmatpush1.msra.mxu0 %v353
  %676 = vmatprep.subr.mxu0 %v350
  %677 = vmatpush1.msra.mxu0 %v349
  %678 = vmatprep.subr.mxu0 %v346
  %679 = vmatpush1.msra.mxu0 %v345
  %680 = vmatprep.subr.mxu0 0.0
  %681 = vmatpush2.msra.mxu0 0.0
  %682 = vmatprep.subr.mxu0 0.0
  %683 = vmatpush2.msra.mxu0 0.0
  %684 = vmatprep.subr.mxu0 0.0
  %685 = vmatpush2.msra.mxu0 0.0
  %686 = vmatprep.subr.mxu0 0.0
  %687 = vmatpush2.msra.mxu0 0.0
  %688 = vmatprep.subr.mxu0 0.0
  %689 = vmatpush2.msra.mxu0 0.0
  %690 = vmatprep.subr.mxu0 0.0
  %691 = vmatpush2.msra.mxu0 0.0
  %692 = vmatprep.subr.mxu0 0.0
  %693 = vmatpush2.msra.mxu0 0.0
  %694 = vmatprep.subr.mxu0 0.0
  %695 = vmatpush2.msra.mxu0 0.0
  %696 = vmatprep.subr.mxu0 0.0
  %697 = vmatpush2.msra.mxu0 0.0
  %698 = vmatprep.subr.mxu0 0.0
  %699 = vmatpush2.msra.mxu0 0.0
  %700 = vmatprep.subr.mxu0 0.0
  %701 = vmatpush2.msra.mxu0 0.0
  %702 = vmatprep.subr.mxu0 0.0
  %703 = vmatpush2.msra.mxu0 0.0
  %704 = vmatprep.subr.mxu0 0.0
  %705 = vmatpush2.msra.mxu0 0.0
  %706 = vmatprep.subr.mxu0 0.0
  %707 = vmatpush2.msra.mxu0 0.0
  %708 = vmatprep.subr.mxu0 0.0
  %709 = vmatpush2.msra.mxu0 0.0
  %710 = vmatprep.subr.mxu0 0.0
  %711 = vmatpush2.msra.mxu0 0.0
  %712 = vmatprep.mubr.f32.mxu0 0.0
  %713 = vmatmul.mubr.f32.gmra.mxu0 %v576
  %v714 = vpop.f32.mrf.mxu0
  %v715 = vadd.f32 0.0, %v714
  %v716 = vpop.f32.mrf.mxu0
  %v717 = vadd.f32 0.0, %v716
  %718 = vdwg.mxu0
  %v723 = vrot.slane %v644, 6
  %v724 = vrot.slane %v646, 6
  %v725 = vrot.slane %v715, 6
  %v726 = vrot.slane %v717, 6
  %v731 = vadd.f32 %v256, %v723
  %v732 = vadd.f32 %v258, %v724
  %v733 = vadd.f32 %v333, %v725
  %v734 = vadd.f32 %v335, %v726
  %v735 = vxor.u32 %v731, 2147483648
  %v736 = vmul.f32 %v735, 1.442695
  %v737 = vpow.pop %v736
  %v738 = vadd.f32 %v737, 1.0
  %v739 = vrcp.pop %v738
  %v740 = vmul.f32 1.0, %v739
  %v741 = vxor.u32 %v732, 2147483648
  %v742 = vmul.f32 %v741, 1.442695
  %v743 = vpow.pop %v742
  %v744 = vadd.f32 %v743, 1.0
  %v745 = vrcp.pop %v744
  %v746 = vmul.f32 1.0, %v745
  %v747 = vtanh.pop %v733
  %v748 = vxor.u32 %v734, 2147483648
  %v749 = vmul.f32 %v748, 1.442695
  %v750 = vpow.pop %v749
  %v751 = vadd.f32 %v750, 1.0
  %v752 = vrcp.pop %v751
  %v753 = vmul.f32 1.0, %v752
  %v755 = vrot.slane %v574, 6
  %v757 = vmul.f32 %v746, %v755
  %v758 = vmul.f32 %v740, %v747
  %v759 = vadd.f32 %v757, %v758
  %v760 = vtanh.pop %v759
  %v761 = vmul.f32 %v753, %v760
  %v763 = vrot.slane %v761, 2
  %765 = vmatprep.subr.mxu0 %v404
  %766 = vmatpush1.msra.mxu0 %v403
  %767 = vmatprep.subr.mxu0 %v400
  %768 = vmatpush1.msra.mxu0 %v399
  %769 = vmatprep.subr.mxu0 %v396
  %770 = vmatpush1.msra.mxu0 %v395
  %771 = vmatprep.subr.mxu0 %v392
  %772 = vmatpush1.msra.mxu0 %v391
  %773 = vmatprep.subr.mxu0 %v388
  %774 = vmatpush1.msra.mxu0 %v387
  %775 = vmatprep.subr.mxu0 %v384
  %776 = vmatpush1.msra.mxu0 %v383
  %777 = vmatprep.subr.mxu0 %v380
  %778 = vmatpush1.msra.mxu0 %v379
  %779 = vmatprep.subr.mxu0 %v376
  %780 = vmatpush1.msra.mxu0 %v375
  %781 = vmatprep.subr.mxu0 %v372
  %782 = vmatpush1.msra.mxu0 %v371
  %783 = vmatprep.subr.mxu0 %v368
  %784 = vmatpush1.msra.mxu0 %v367
  %785 = vmatprep.subr.mxu0 %v364
  %786 = vmatpush1.msra.mxu0 %v363
  %787 = vmatprep.subr.mxu0 %v360
  %788 = vmatpush1.msra.mxu0 %v359
  %789 = vmatprep.subr.mxu0 %v356
  %790 = vmatpush1.msra.mxu0 %v355
  %791 = vmatprep.subr.mxu0 %v352
  %792 = vmatpush1.msra.mxu0 %v351
  %793 = vmatprep.subr.mxu0 %v348
  %794 = vmatpush1.msra.mxu0 %v347
  %795 = vmatprep.subr.mxu0 %v344
  %796 = vmatpush1.msra.mxu0 %v343
  %797 = vmatprep.subr.mxu0 0.0
  %798 = vmatpush2.msra.mxu0 0.0
  %799 = vmatprep.subr.mxu0 0.0
  %800 = vmatpush2.msra.mxu0 0.0
  %801 = vmatprep.subr.mxu0 0.0
  %802 = vmatpush2.msra.mxu0 0.0
  %803 = vmatprep.subr.mxu0 0.0
  %804 = vmatpush2.msra.mxu0 0.0
  %805 = vmatprep.subr.mxu0 0.0
  %806 = vmatpush2.msra.mxu0 0.0
  %807 = vmatprep.subr.mxu0 0.0
  %808 = vmatpush2.msra.mxu0 0.0
  %809 = vmatprep.subr.mxu0 0.0
  %810 = vmatpush2.msra.mxu0 0.0
  %811 = vmatprep.subr.mxu0 0.0
  %812 = vmatpush2.msra.mxu0 0.0
  %813 = vmatprep.subr.mxu0 0.0
  %814 = vmatpush2.msra.mxu0 0.0
  %815 = vmatprep.subr.mxu0 0.0
  %816 = vmatpush2.msra.mxu0 0.0
  %817 = vmatprep.subr.mxu0 0.0
  %818 = vmatpush2.msra.mxu0 0.0
  %819 = vmatprep.subr.mxu0 0.0
  %820 = vmatpush2.msra.mxu0 0.0
  %821 = vmatprep.subr.mxu0 0.0
  %822 = vmatpush2.msra.mxu0 0.0
  %823 = vmatprep.subr.mxu0 0.0
  %824 = vmatpush2.msra.mxu0 0.0
  %825 = vmatprep.subr.mxu0 0.0
  %826 = vmatpush2.msra.mxu0 0.0
  %827 = vmatprep.subr.mxu0 0.0
  %828 = vmatpush2.msra.mxu0 0.0
  %829 = vmatprep.mubr.f32.mxu0 0.0
  %830 = vmatmul.mubr.f32.gmra.mxu0 %v763
  %v831 = vpop.f32.mrf.mxu0
  %v832 = vadd.f32 0.0, %v831
  %v833 = vpop.f32.mrf.mxu0
  %v834 = vadd.f32 0.0, %v833
  %835 = vdwg.mxu0
  %836 = vmatprep.subr.mxu0 %v406
  %837 = vmatpush1.msra.mxu0 %v405
  %838 = vmatprep.subr.mxu0 %v402
  %839 = vmatpush1.msra.mxu0 %v401
  %840 = vmatprep.subr.mxu0 %v398
  %841 = vmatpush1.msra.mxu0 %v397
  %842 = vmatprep.subr.mxu0 %v394
  %843 = vmatpush1.msra.mxu0 %v393
  %844 = vmatprep.subr.mxu0 %v390
  %845 = vmatpush1.msra.mxu0 %v389
  %846 = vmatprep.subr.mxu0 %v386
  %847 = vmatpush1.msra.mxu0 %v385
  %848 = vmatprep.subr.mxu0 %v382
  %849 = vmatpush1.msra.mxu0 %v381
  %850 = vmatprep.subr.mxu0 %v378
  %851 = vmatpush1.msra.mxu0 %v377
  %852 = vmatprep.subr.mxu0 %v374
  %853 = vmatpush1.msra.mxu0 %v373
  %854 = vmatprep.subr.mxu0 %v370
  %855 = vmatpush1.msra.mxu0 %v369
  %856 = vmatprep.subr.mxu0 %v366
  %857 = vmatpush1.msra.mxu0 %v365
  %858 = vmatprep.subr.mxu0 %v362
  %859 = vmatpush1.msra.mxu0 %v361
  %860 = vmatprep.subr.mxu0 %v358
  %861 = vmatpush1.msra.mxu0 %v357
  %862 = vmatprep.subr.mxu0 %v354
  %863 = vmatpush1.msra.mxu0 %v353
  %864 = vmatprep.subr.mxu0 %v350
  %865 = vmatpush1.msra.mxu0 %v349
  %866 = vmatprep.subr.mxu0 %v346
  %867 = vmatpush1.msra.mxu0 %v345
  %868 = vmatprep.subr.mxu0 0.0
  %869 = vmatpush2.msra.mxu0 0.0
  %870 = vmatprep.subr.mxu0 0.0
  %871 = vmatpush2.msra.mxu0 0.0
  %872 = vmatprep.subr.mxu0 0.0
  %873 = vmatpush2.msra.mxu0 0.0
  %874 = vmatprep.subr.mxu0 0.0
  %875 = vmatpush2.msra.mxu0 0.0
  %876 = vmatprep.subr.mxu0 0.0
  %877 = vmatpush2.msra.mxu0 0.0
  %878 = vmatprep.subr.mxu0 0.0
  %879 = vmatpush2.msra.mxu0 0.0
  %880 = vmatprep.subr.mxu0 0.0
  %881 = vmatpush2.msra.mxu0 0.0
  %882 = vmatprep.subr.mxu0 0.0
  %883 = vmatpush2.msra.mxu0 0.0
  %884 = vmatprep.subr.mxu0 0.0
  %885 = vmatpush2.msra.mxu0 0.0
  %886 = vmatprep.subr.mxu0 0.0
  %887 = vmatpush2.msra.mxu0 0.0
  %888 = vmatprep.subr.mxu0 0.0
  %889 = vmatpush2.msra.mxu0 0.0
  %890 = vmatprep.subr.mxu0 0.0
  %891 = vmatpush2.msra.mxu0 0.0
  %892 = vmatprep.subr.mxu0 0.0
  %893 = vmatpush2.msra.mxu0 0.0
  %894 = vmatprep.subr.mxu0 0.0
  %895 = vmatpush2.msra.mxu0 0.0
  %896 = vmatprep.subr.mxu0 0.0
  %897 = vmatpush2.msra.mxu0 0.0
  %898 = vmatprep.subr.mxu0 0.0
  %899 = vmatpush2.msra.mxu0 0.0
  %900 = vmatprep.mubr.f32.mxu0 0.0
  %901 = vmatmul.mubr.f32.gmra.mxu0 %v763
  %v902 = vpop.f32.mrf.mxu0
  %v903 = vadd.f32 0.0, %v902
  %v904 = vpop.f32.mrf.mxu0
  %v905 = vadd.f32 0.0, %v904
  %906 = vdwg.mxu0
  %v911 = vrot.slane %v832, 4
  %v912 = vrot.slane %v834, 4
  %v913 = vrot.slane %v903, 4
  %v914 = vrot.slane %v905, 4
  %v919 = vadd.f32 %v256, %v911
  %v920 = vadd.f32 %v258, %v912
  %v921 = vadd.f32 %v333, %v913
  %v922 = vadd.f32 %v335, %v914
  %v923 = vxor.u32 %v919, 2147483648
  %v924 = vmul.f32 %v923, 1.442695
  %v925 = vpow.pop %v924
  %v926 = vadd.f32 %v925, 1.0
  %v927 = vrcp.pop %v926
  %v928 = vmul.f32 1.0, %v927
  %v929 = vxor.u32 %v920, 2147483648
  %v930 = vmul.f32 %v929, 1.442695
  %v931 = vpow.pop %v930
  %v932 = vadd.f32 %v931, 1.0
  %v933 = vrcp.pop %v932
  %v934 = vmul.f32 1.0, %v933
  %v935 = vtanh.pop %v921
  %v936 = vxor.u32 %v922, 2147483648
  %v937 = vmul.f32 %v936, 1.442695
  %v938 = vpow.pop %v937
  %v939 = vadd.f32 %v938, 1.0
  %v940 = vrcp.pop %v939
  %v941 = vmul.f32 1.0, %v940
  %v943 = vrot.slane %v759, 6
  %v945 = vmul.f32 %v934, %v943
  %v946 = vmul.f32 %v928, %v935
  %v947 = vadd.f32 %v945, %v946
  %v948 = vtanh.pop %v947
  %v949 = vmul.f32 %v941, %v948
  %v951 = vrot.slane %v949, 4
  %953 = vmatprep.subr.mxu0 %v404
  %954 = vmatpush1.msra.mxu0 %v403
  %955 = vmatprep.subr.mxu0 %v400
  %956 = vmatpush1.msra.mxu0 %v399
  %957 = vmatprep.subr.mxu0 %v396
  %958 = vmatpush1.msra.mxu0 %v395
  %959 = vmatprep.subr.mxu0 %v392
  %960 = vmatpush1.msra.mxu0 %v391
  %961 = vmatprep.subr.mxu0 %v388
  %962 = vmatpush1.msra.mxu0 %v387
  %963 = vmatprep.subr.mxu0 %v384
  %964 = vmatpush1.msra.mxu0 %v383
  %965 = vmatprep.subr.mxu0 %v380
  %966 = vmatpush1.msra.mxu0 %v379
  %967 = vmatprep.subr.mxu0 %v376
  %968 = vmatpush1.msra.mxu0 %v375
  %969 = vmatprep.subr.mxu0 %v372
  %970 = vmatpush1.msra.mxu0 %v371
  %971 = vmatprep.subr.mxu0 %v368
  %972 = vmatpush1.msra.mxu0 %v367
  %973 = vmatprep.subr.mxu0 %v364
  %974 = vmatpush1.msra.mxu0 %v363
  %975 = vmatprep.subr.mxu0 %v360
  %976 = vmatpush1.msra.mxu0 %v359
  %977 = vmatprep.subr.mxu0 %v356
  %978 = vmatpush1.msra.mxu0 %v355
  %979 = vmatprep.subr.mxu0 %v352
  %980 = vmatpush1.msra.mxu0 %v351
  %981 = vmatprep.subr.mxu0 %v348
  %982 = vmatpush1.msra.mxu0 %v347
  %983 = vmatprep.subr.mxu0 %v344
  %984 = vmatpush1.msra.mxu0 %v343
  %985 = vmatprep.subr.mxu0 0.0
  %986 = vmatpush2.msra.mxu0 0.0
  %987 = vmatprep.subr.mxu0 0.0
  %988 = vmatpush2.msra.mxu0 0.0
  %989 = vmatprep.subr.mxu0 0.0
  %990 = vmatpush2.msra.mxu0 0.0
  %991 = vmatprep.subr.mxu0 0.0
  %992 = vmatpush2.msra.mxu0 0.0
  %993 = vmatprep.subr.mxu0 0.0
  %994 = vmatpush2.msra.mxu0 0.0
  %995 = vmatprep.subr.mxu0 0.0
  %996 = vmatpush2.msra.mxu0 0.0
  %997 = vmatprep.subr.mxu0 0.0
  %998 = vmatpush2.msra.mxu0 0.0
  %999 = vmatprep.subr.mxu0 0.0
  %1000 = vmatpush2.msra.mxu0 0.0
  %1001 = vmatprep.subr.mxu0 0.0
  %1002 = vmatpush2.msra.mxu0 0.0
  %1003 = vmatprep.subr.mxu0 0.0
  %1004 = vmatpush2.msra.mxu0 0.0
  %1005 = vmatprep.subr.mxu0 0.0
  %1006 = vmatpush2.msra.mxu0 0.0
  %1007 = vmatprep.subr.mxu0 0.0
  %1008 = vmatpush2.msra.mxu0 0.0
  %1009 = vmatprep.subr.mxu0 0.0
  %1010 = vmatpush2.msra.mxu0 0.0
  %1011 = vmatprep.subr.mxu0 0.0
  %1012 = vmatpush2.msra.mxu0 0.0
  %1013 = vmatprep.subr.mxu0 0.0
  %1014 = vmatpush2.msra.mxu0 0.0
  %1015 = vmatprep.subr.mxu0 0.0
  %1016 = vmatpush2.msra.mxu0 0.0
  %1017 = vmatprep.mubr.f32.mxu0 0.0
  %1018 = vmatmul.mubr.f32.gmra.mxu0 %v951
  %v1019 = vpop.f32.mrf.mxu0
  %v1020 = vadd.f32 0.0, %v1019
  %v1021 = vpop.f32.mrf.mxu0
  %v1022 = vadd.f32 0.0, %v1021
  %1023 = vdwg.mxu0
  %1024 = vmatprep.subr.mxu0 %v406
  %1025 = vmatpush1.msra.mxu0 %v405
  %1026 = vmatprep.subr.mxu0 %v402
  %1027 = vmatpush1.msra.mxu0 %v401
  %1028 = vmatprep.subr.mxu0 %v398
  %1029 = vmatpush1.msra.mxu0 %v397
  %1030 = vmatprep.subr.mxu0 %v394
  %1031 = vmatpush1.msra.mxu0 %v393
  %1032 = vmatprep.subr.mxu0 %v390
  %1033 = vmatpush1.msra.mxu0 %v389
  %1034 = vmatprep.subr.mxu0 %v386
  %1035 = vmatpush1.msra.mxu0 %v385
  %1036 = vmatprep.subr.mxu0 %v382
  %1037 = vmatpush1.msra.mxu0 %v381
  %1038 = vmatprep.subr.mxu0 %v378
  %1039 = vmatpush1.msra.mxu0 %v377
  %1040 = vmatprep.subr.mxu0 %v374
  %1041 = vmatpush1.msra.mxu0 %v373
  %1042 = vmatprep.subr.mxu0 %v370
  %1043 = vmatpush1.msra.mxu0 %v369
  %1044 = vmatprep.subr.mxu0 %v366
  %1045 = vmatpush1.msra.mxu0 %v365
  %1046 = vmatprep.subr.mxu0 %v362
  %1047 = vmatpush1.msra.mxu0 %v361
  %1048 = vmatprep.subr.mxu0 %v358
  %1049 = vmatpush1.msra.mxu0 %v357
  %1050 = vmatprep.subr.mxu0 %v354
  %1051 = vmatpush1.msra.mxu0 %v353
  %1052 = vmatprep.subr.mxu0 %v350
  %1053 = vmatpush1.msra.mxu0 %v349
  %1054 = vmatprep.subr.mxu0 %v346
  %1055 = vmatpush1.msra.mxu0 %v345
  %1056 = vmatprep.subr.mxu0 0.0
  %1057 = vmatpush2.msra.mxu0 0.0
  %1058 = vmatprep.subr.mxu0 0.0
  %1059 = vmatpush2.msra.mxu0 0.0
  %1060 = vmatprep.subr.mxu0 0.0
  %1061 = vmatpush2.msra.mxu0 0.0
  %1062 = vmatprep.subr.mxu0 0.0
  %1063 = vmatpush2.msra.mxu0 0.0
  %1064 = vmatprep.subr.mxu0 0.0
  %1065 = vmatpush2.msra.mxu0 0.0
  %1066 = vmatprep.subr.mxu0 0.0
  %1067 = vmatpush2.msra.mxu0 0.0
  %1068 = vmatprep.subr.mxu0 0.0
  %1069 = vmatpush2.msra.mxu0 0.0
  %1070 = vmatprep.subr.mxu0 0.0
  %1071 = vmatpush2.msra.mxu0 0.0
  %1072 = vmatprep.subr.mxu0 0.0
  %1073 = vmatpush2.msra.mxu0 0.0
  %1074 = vmatprep.subr.mxu0 0.0
  %1075 = vmatpush2.msra.mxu0 0.0
  %1076 = vmatprep.subr.mxu0 0.0
  %1077 = vmatpush2.msra.mxu0 0.0
  %1078 = vmatprep.subr.mxu0 0.0
  %1079 = vmatpush2.msra.mxu0 0.0
  %1080 = vmatprep.subr.mxu0 0.0
  %1081 = vmatpush2.msra.mxu0 0.0
  %1082 = vmatprep.subr.mxu0 0.0
  %1083 = vmatpush2.msra.mxu0 0.0
  %1084 = vmatprep.subr.mxu0 0.0
  %1085 = vmatpush2.msra.mxu0 0.0
  %1086 = vmatprep.subr.mxu0 0.0
  %1087 = vmatpush2.msra.mxu0 0.0
  %1088 = vmatprep.mubr.f32.mxu0 0.0
  %1089 = vmatmul.mubr.f32.gmra.mxu0 %v951
  %v1090 = vpop.f32.mrf.mxu0
  %v1091 = vadd.f32 0.0, %v1090
  %v1092 = vpop.f32.mrf.mxu0
  %v1093 = vadd.f32 0.0, %v1092
  %1094 = vdwg.mxu0
  %v1099 = vrot.slane %v1020, 2
  %v1100 = vrot.slane %v1022, 2
  %v1101 = vrot.slane %v1091, 2
  %v1102 = vrot.slane %v1093, 2
  %v1107 = vadd.f32 %v256, %v1099
  %v1108 = vadd.f32 %v258, %v1100
  %v1109 = vadd.f32 %v333, %v1101
  %v1110 = vadd.f32 %v335, %v1102
  %v1111 = vxor.u32 %v1107, 2147483648
  %v1112 = vmul.f32 %v1111, 1.442695
  %v1113 = vpow.pop %v1112
  %v1114 = vadd.f32 %v1113, 1.0
  %v1115 = vrcp.pop %v1114
  %v1116 = vmul.f32 1.0, %v1115
  %v1117 = vxor.u32 %v1108, 2147483648
  %v1118 = vmul.f32 %v1117, 1.442695
  %v1119 = vpow.pop %v1118
  %v1120 = vadd.f32 %v1119, 1.0
  %v1121 = vrcp.pop %v1120
  %v1122 = vmul.f32 1.0, %v1121
  %v1123 = vtanh.pop %v1109
  %v1124 = vxor.u32 %v1110, 2147483648
  %v1125 = vmul.f32 %v1124, 1.442695
  %v1126 = vpow.pop %v1125
  %v1127 = vadd.f32 %v1126, 1.0
  %v1128 = vrcp.pop %v1127
  %v1129 = vmul.f32 1.0, %v1128
  %v1131 = vrot.slane %v947, 6
  %v1133 = vmul.f32 %v1122, %v1131
  %v1134 = vmul.f32 %v1116, %v1123
  %v1135 = vadd.f32 %v1133, %v1134
  %v1136 = vtanh.pop %v1135
  %v1137 = vmul.f32 %v1129, %v1136
  %v1139 = vrot.slane %v1137, 6
  %1141 = vmatprep.subr.mxu0 %v404
  %1142 = vmatpush1.msra.mxu0 %v403
  %1143 = vmatprep.subr.mxu0 %v400
  %1144 = vmatpush1.msra.mxu0 %v399
  %1145 = vmatprep.subr.mxu0 %v396
  %1146 = vmatpush1.msra.mxu0 %v395
  %1147 = vmatprep.subr.mxu0 %v392
  %1148 = vmatpush1.msra.mxu0 %v391
  %1149 = vmatprep.subr.mxu0 %v388
  %1150 = vmatpush1.msra.mxu0 %v387
  %1151 = vmatprep.subr.mxu0 %v384
  %1152 = vmatpush1.msra.mxu0 %v383
  %1153 = vmatprep.subr.mxu0 %v380
  %1154 = vmatpush1.msra.mxu0 %v379
  %1155 = vmatprep.subr.mxu0 %v376
  %1156 = vmatpush1.msra.mxu0 %v375
  %1157 = vmatprep.subr.mxu0 %v372
  %1158 = vmatpush1.msra.mxu0 %v371
  %1159 = vmatprep.subr.mxu0 %v368
  %1160 = vmatpush1.msra.mxu0 %v367
  %1161 = vmatprep.subr.mxu0 %v364
  %1162 = vmatpush1.msra.mxu0 %v363
  %1163 = vmatprep.subr.mxu0 %v360
  %1164 = vmatpush1.msra.mxu0 %v359
  %1165 = vmatprep.subr.mxu0 %v356
  %1166 = vmatpush1.msra.mxu0 %v355
  %1167 = vmatprep.subr.mxu0 %v352
  %1168 = vmatpush1.msra.mxu0 %v351
  %1169 = vmatprep.subr.mxu0 %v348
  %1170 = vmatpush1.msra.mxu0 %v347
  %1171 = vmatprep.subr.mxu0 %v344
  %1172 = vmatpush1.msra.mxu0 %v343
  %1173 = vmatprep.subr.mxu0 0.0
  %1174 = vmatpush2.msra.mxu0 0.0
  %1175 = vmatprep.subr.mxu0 0.0
  %1176 = vmatpush2.msra.mxu0 0.0
  %1177 = vmatprep.subr.mxu0 0.0
  %1178 = vmatpush2.msra.mxu0 0.0
  %1179 = vmatprep.subr.mxu0 0.0
  %1180 = vmatpush2.msra.mxu0 0.0
  %1181 = vmatprep.subr.mxu0 0.0
  %1182 = vmatpush2.msra.mxu0 0.0
  %1183 = vmatprep.subr.mxu0 0.0
  %1184 = vmatpush2.msra.mxu0 0.0
  %1185 = vmatprep.subr.mxu0 0.0
  %1186 = vmatpush2.msra.mxu0 0.0
  %1187 = vmatprep.subr.mxu0 0.0
  %1188 = vmatpush2.msra.mxu0 0.0
  %1189 = vmatprep.subr.mxu0 0.0
  %1190 = vmatpush2.msra.mxu0 0.0
  %1191 = vmatprep.subr.mxu0 0.0
  %1192 = vmatpush2.msra.mxu0 0.0
  %1193 = vmatprep.subr.mxu0 0.0
  %1194 = vmatpush2.msra.mxu0 0.0
  %1195 = vmatprep.subr.mxu0 0.0
  %1196 = vmatpush2.msra.mxu0 0.0
  %1197 = vmatprep.subr.mxu0 0.0
  %1198 = vmatpush2.msra.mxu0 0.0
  %1199 = vmatprep.subr.mxu0 0.0
  %1200 = vmatpush2.msra.mxu0 0.0
  %1201 = vmatprep.subr.mxu0 0.0
  %1202 = vmatpush2.msra.mxu0 0.0
  %1203 = vmatprep.subr.mxu0 0.0
  %1204 = vmatpush2.msra.mxu0 0.0
  %1205 = vmatprep.mubr.f32.mxu0 0.0
  %1206 = vmatmul.mubr.f32.gmra.mxu0 %v1139
  %v1207 = vpop.f32.mrf.mxu0
  %v1208 = vadd.f32 0.0, %v1207
  %v1209 = vpop.f32.mrf.mxu0
  %v1210 = vadd.f32 0.0, %v1209
  %1211 = vdwg.mxu0
  %1212 = vmatprep.subr.mxu0 %v406
  %1213 = vmatpush1.msra.mxu0 %v405
  %1214 = vmatprep.subr.mxu0 %v402
  %1215 = vmatpush1.msra.mxu0 %v401
  %1216 = vmatprep.subr.mxu0 %v398
  %1217 = vmatpush1.msra.mxu0 %v397
  %1218 = vmatprep.subr.mxu0 %v394
  %1219 = vmatpush1.msra.mxu0 %v393
  %1220 = vmatprep.subr.mxu0 %v390
  %1221 = vmatpush1.msra.mxu0 %v389
  %1222 = vmatprep.subr.mxu0 %v386
  %1223 = vmatpush1.msra.mxu0 %v385
  %1224 = vmatprep.subr.mxu0 %v382
  %1225 = vmatpush1.msra.mxu0 %v381
  %1226 = vmatprep.subr.mxu0 %v378
  %1227 = vmatpush1.msra.mxu0 %v377
  %1228 = vmatprep.subr.mxu0 %v374
  %1229 = vmatpush1.msra.mxu0 %v373
  %1230 = vmatprep.subr.mxu0 %v370
  %1231 = vmatpush1.msra.mxu0 %v369
  %1232 = vmatprep.subr.mxu0 %v366
  %1233 = vmatpush1.msra.mxu0 %v365
  %1234 = vmatprep.subr.mxu0 %v362
  %1235 = vmatpush1.msra.mxu0 %v361
  %1236 = vmatprep.subr.mxu0 %v358
  %1237 = vmatpush1.msra.mxu0 %v357
  %1238 = vmatprep.subr.mxu0 %v354
  %1239 = vmatpush1.msra.mxu0 %v353
  %1240 = vmatprep.subr.mxu0 %v350
  %1241 = vmatpush1.msra.mxu0 %v349
  %1242 = vmatprep.subr.mxu0 %v346
  %1243 = vmatpush1.msra.mxu0 %v345
  %1244 = vmatprep.subr.mxu0 0.0
  %1245 = vmatpush2.msra.mxu0 0.0
  %1246 = vmatprep.subr.mxu0 0.0
  %1247 = vmatpush2.msra.mxu0 0.0
  %1248 = vmatprep.subr.mxu0 0.0
  %1249 = vmatpush2.msra.mxu0 0.0
  %1250 = vmatprep.subr.mxu0 0.0
  %1251 = vmatpush2.msra.mxu0 0.0
  %1252 = vmatprep.subr.mxu0 0.0
  %1253 = vmatpush2.msra.mxu0 0.0
  %1254 = vmatprep.subr.mxu0 0.0
  %1255 = vmatpush2.msra.mxu0 0.0
  %1256 = vmatprep.subr.mxu0 0.0
  %1257 = vmatpush2.msra.mxu0 0.0
  %1258 = vmatprep.subr.mxu0 0.0
  %1259 = vmatpush2.msra.mxu0 0.0
  %1260 = vmatprep.subr.mxu0 0.0
  %1261 = vmatpush2.msra.mxu0 0.0
  %1262 = vmatprep.subr.mxu0 0.0
  %1263 = vmatpush2.msra.mxu0 0.0
  %1264 = vmatprep.subr.mxu0 0.0
  %1265 = vmatpush2.msra.mxu0 0.0
  %1266 = vmatprep.subr.mxu0 0.0
  %1267 = vmatpush2.msra.mxu0 0.0
  %1268 = vmatprep.subr.mxu0 0.0
  %1269 = vmatpush2.msra.mxu0 0.0
  %1270 = vmatprep.subr.mxu0 0.0
  %1271 = vmatpush2.msra.mxu0 0.0
  %1272 = vmatprep.subr.mxu0 0.0
  %1273 = vmatpush2.msra.mxu0 0.0
  %1274 = vmatprep.subr.mxu0 0.0
  %1275 = vmatpush2.msra.mxu0 0.0
  %1276 = vmatprep.mubr.f32.mxu0 0.0
  %1277 = vmatmul.mubr.f32.gmra.mxu0 %v1139
  %v1278 = vpop.f32.mrf.mxu0
  %v1279 = vadd.f32 0.0, %v1278
  %v1280 = vpop.f32.mrf.mxu0
  %v1281 = vadd.f32 0.0, %v1280
  %1282 = vdwg.mxu0
  %v1283 = vadd.f32 %v262, %v1208
  %v1284 = vadd.f32 %v264, %v1210
  %v1285 = vadd.f32 %v339, %v1279
  %v1286 = vadd.f32 %v341, %v1281
  %v1287 = vxor.u32 %v1283, 2147483648
  %v1288 = vmul.f32 %v1287, 1.442695
  %v1289 = vpow.pop %v1288
  %v1290 = vadd.f32 %v1289, 1.0
  %v1291 = vrcp.pop %v1290
  %v1292 = vmul.f32 1.0, %v1291
  %v1293 = vxor.u32 %v1284, 2147483648
  %v1294 = vmul.f32 %v1293, 1.442695
  %v1295 = vpow.pop %v1294
  %v1296 = vadd.f32 %v1295, 1.0
  %v1297 = vrcp.pop %v1296
  %v1298 = vmul.f32 1.0, %v1297
  %v1299 = vtanh.pop %v1285
  %v1300 = vxor.u32 %v1286, 2147483648
  %v1301 = vmul.f32 %v1300, 1.442695
  %v1302 = vpow.pop %v1301
  %v1303 = vadd.f32 %v1302, 1.0
  %v1304 = vrcp.pop %v1303
  %v1305 = vmul.f32 1.0, %v1304
  %v1307 = vrot.slane %v1135, 6
  %v1309 = vmul.f32 %v1298, %v1307
  %v1310 = vmul.f32 %v1292, %v1299
  %v1311 = vadd.f32 %v1309, %v1310
  %v1312 = vtanh.pop %v1311
  %v1313 = vmul.f32 %v1305, %v1312
  %1314 = vmatprep.subr.mxu0 %v404
  %1315 = vmatpush1.msra.mxu0 %v403
  %1316 = vmatprep.subr.mxu0 %v400
  %1317 = vmatpush1.msra.mxu0 %v399
  %1318 = vmatprep.subr.mxu0 %v396
  %1319 = vmatpush1.msra.mxu0 %v395
  %1320 = vmatprep.subr.mxu0 %v392
  %1321 = vmatpush1.msra.mxu0 %v391
  %1322 = vmatprep.subr.mxu0 %v388
  %1323 = vmatpush1.msra.mxu0 %v387
  %1324 = vmatprep.subr.mxu0 %v384
  %1325 = vmatpush1.msra.mxu0 %v383
  %1326 = vmatprep.subr.mxu0 %v380
  %1327 = vmatpush1.msra.mxu0 %v379
  %1328 = vmatprep.subr.mxu0 %v376
  %1329 = vmatpush1.msra.mxu0 %v375
  %1330 = vmatprep.subr.mxu0 %v372
  %1331 = vmatpush1.msra.mxu0 %v371
  %1332 = vmatprep.subr.mxu0 %v368
  %1333 = vmatpush1.msra.mxu0 %v367
  %1334 = vmatprep.subr.mxu0 %v364
  %1335 = vmatpush1.msra.mxu0 %v363
  %1336 = vmatprep.subr.mxu0 %v360
  %1337 = vmatpush1.msra.mxu0 %v359
  %1338 = vmatprep.subr.mxu0 %v356
  %1339 = vmatpush1.msra.mxu0 %v355
  %1340 = vmatprep.subr.mxu0 %v352
  %1341 = vmatpush1.msra.mxu0 %v351
  %1342 = vmatprep.subr.mxu0 %v348
  %1343 = vmatpush1.msra.mxu0 %v347
  %1344 = vmatprep.subr.mxu0 %v344
  %1345 = vmatpush1.msra.mxu0 %v343
  %1346 = vmatprep.subr.mxu0 0.0
  %1347 = vmatpush2.msra.mxu0 0.0
  %1348 = vmatprep.subr.mxu0 0.0
  %1349 = vmatpush2.msra.mxu0 0.0
  %1350 = vmatprep.subr.mxu0 0.0
  %1351 = vmatpush2.msra.mxu0 0.0
  %1352 = vmatprep.subr.mxu0 0.0
  %1353 = vmatpush2.msra.mxu0 0.0
  %1354 = vmatprep.subr.mxu0 0.0
  %1355 = vmatpush2.msra.mxu0 0.0
  %1356 = vmatprep.subr.mxu0 0.0
  %1357 = vmatpush2.msra.mxu0 0.0
  %1358 = vmatprep.subr.mxu0 0.0
  %1359 = vmatpush2.msra.mxu0 0.0
  %1360 = vmatprep.subr.mxu0 0.0
  %1361 = vmatpush2.msra.mxu0 0.0
  %1362 = vmatprep.subr.mxu0 0.0
  %1363 = vmatpush2.msra.mxu0 0.0
  %1364 = vmatprep.subr.mxu0 0.0
  %1365 = vmatpush2.msra.mxu0 0.0
  %1366 = vmatprep.subr.mxu0 0.0
  %1367 = vmatpush2.msra.mxu0 0.0
  %1368 = vmatprep.subr.mxu0 0.0
  %1369 = vmatpush2.msra.mxu0 0.0
  %1370 = vmatprep.subr.mxu0 0.0
  %1371 = vmatpush2.msra.mxu0 0.0
  %1372 = vmatprep.subr.mxu0 0.0
  %1373 = vmatpush2.msra.mxu0 0.0
  %1374 = vmatprep.subr.mxu0 0.0
  %1375 = vmatpush2.msra.mxu0 0.0
  %1376 = vmatprep.subr.mxu0 0.0
  %1377 = vmatpush2.msra.mxu0 0.0
  %1378 = vmatprep.mubr.f32.mxu0 0.0
  %1379 = vmatmul.mubr.f32.gmra.mxu0 %v1313
  %v1380 = vpop.f32.mrf.mxu0
  %v1381 = vadd.f32 0.0, %v1380
  %v1382 = vpop.f32.mrf.mxu0
  %v1383 = vadd.f32 0.0, %v1382
  %1384 = vdwg.mxu0
  %1385 = vmatprep.subr.mxu0 %v406
  %1386 = vmatpush1.msra.mxu0 %v405
  %1387 = vmatprep.subr.mxu0 %v402
  %1388 = vmatpush1.msra.mxu0 %v401
  %1389 = vmatprep.subr.mxu0 %v398
  %1390 = vmatpush1.msra.mxu0 %v397
  %1391 = vmatprep.subr.mxu0 %v394
  %1392 = vmatpush1.msra.mxu0 %v393
  %1393 = vmatprep.subr.mxu0 %v390
  %1394 = vmatpush1.msra.mxu0 %v389
  %1395 = vmatprep.subr.mxu0 %v386
  %1396 = vmatpush1.msra.mxu0 %v385
  %1397 = vmatprep.subr.mxu0 %v382
  %1398 = vmatpush1.msra.mxu0 %v381
  %1399 = vmatprep.subr.mxu0 %v378
  %1400 = vmatpush1.msra.mxu0 %v377
  %1401 = vmatprep.subr.mxu0 %v374
  %1402 = vmatpush1.msra.mxu0 %v373
  %1403 = vmatprep.subr.mxu0 %v370
  %1404 = vmatpush1.msra.mxu0 %v369
  %1405 = vmatprep.subr.mxu0 %v366
  %1406 = vmatpush1.msra.mxu0 %v365
  %1407 = vmatprep.subr.mxu0 %v362
  %1408 = vmatpush1.msra.mxu0 %v361
  %1409 = vmatprep.subr.mxu0 %v358
  %1410 = vmatpush1.msra.mxu0 %v357
  %1411 = vmatprep.subr.mxu0 %v354
  %1412 = vmatpush1.msra.mxu0 %v353
  %1413 = vmatprep.subr.mxu0 %v350
  %1414 = vmatpush1.msra.mxu0 %v349
  %1415 = vmatprep.subr.mxu0 %v346
  %1416 = vmatpush1.msra.mxu0 %v345
  %1417 = vmatprep.subr.mxu0 0.0
  %1418 = vmatpush2.msra.mxu0 0.0
  %1419 = vmatprep.subr.mxu0 0.0
  %1420 = vmatpush2.msra.mxu0 0.0
  %1421 = vmatprep.subr.mxu0 0.0
  %1422 = vmatpush2.msra.mxu0 0.0
  %1423 = vmatprep.subr.mxu0 0.0
  %1424 = vmatpush2.msra.mxu0 0.0
  %1425 = vmatprep.subr.mxu0 0.0
  %1426 = vmatpush2.msra.mxu0 0.0
  %1427 = vmatprep.subr.mxu0 0.0
  %1428 = vmatpush2.msra.mxu0 0.0
  %1429 = vmatprep.subr.mxu0 0.0
  %1430 = vmatpush2.msra.mxu0 0.0
  %1431 = vmatprep.subr.mxu0 0.0
  %1432 = vmatpush2.msra.mxu0 0.0
  %1433 = vmatprep.subr.mxu0 0.0
  %1434 = vmatpush2.msra.mxu0 0.0
  %1435 = vmatprep.subr.mxu0 0.0
  %1436 = vmatpush2.msra.mxu0 0.0
  %1437 = vmatprep.subr.mxu0 0.0
  %1438 = vmatpush2.msra.mxu0 0.0
  %1439 = vmatprep.subr.mxu0 0.0
  %1440 = vmatpush2.msra.mxu0 0.0
  %1441 = vmatprep.subr.mxu0 0.0
  %1442 = vmatpush2.msra.mxu0 0.0
  %1443 = vmatprep.subr.mxu0 0.0
  %1444 = vmatpush2.msra.mxu0 0.0
  %1445 = vmatprep.subr.mxu0 0.0
  %1446 = vmatpush2.msra.mxu0 0.0
  %1447 = vmatprep.subr.mxu0 0.0
  %1448 = vmatpush2.msra.mxu0 0.0
  %1449 = vmatprep.mubr.f32.mxu0 0.0
  %1450 = vmatmul.mubr.f32.gmra.mxu0 %v1313
  %v1451 = vpop.f32.mrf.mxu0
  %v1452 = vadd.f32 0.0, %v1451
  %v1453 = vpop.f32.mrf.mxu0
  %v1454 = vadd.f32 0.0, %v1453
  %1455 = vdwg.mxu0
  %v1460 = vrot.slane %v1381, 6
  %v1461 = vrot.slane %v1383, 6
  %v1462 = vrot.slane %v1452, 6
  %v1463 = vrot.slane %v1454, 6
  %v1468 = vadd.f32 %v262, %v1460
  %v1469 = vadd.f32 %v264, %v1461
  %v1470 = vadd.f32 %v339, %v1462
  %v1471 = vadd.f32 %v341, %v1463
  %v1472 = vxor.u32 %v1468, 2147483648
  %v1473 = vmul.f32 %v1472, 1.442695
  %v1474 = vpow.pop %v1473
  %v1475 = vadd.f32 %v1474, 1.0
  %v1476 = vrcp.pop %v1475
  %v1477 = vmul.f32 1.0, %v1476
  %v1478 = vxor.u32 %v1469, 2147483648
  %v1479 = vmul.f32 %v1478, 1.442695
  %v1480 = vpow.pop %v1479
  %v1481 = vadd.f32 %v1480, 1.0
  %v1482 = vrcp.pop %v1481
  %v1483 = vmul.f32 1.0, %v1482
  %v1484 = vtanh.pop %v1470
  %v1485 = vxor.u32 %v1471, 2147483648
  %v1486 = vmul.f32 %v1485, 1.442695
  %v1487 = vpow.pop %v1486
  %v1488 = vadd.f32 %v1487, 1.0
  %v1489 = vrcp.pop %v1488
  %v1490 = vmul.f32 1.0, %v1489
  %v1492 = vrot.slane %v1311, 6
  %v1494 = vmul.f32 %v1483, %v1492
  %v1495 = vmul.f32 %v1477, %v1484
  %v1496 = vadd.f32 %v1494, %v1495
  %v1497 = vtanh.pop %v1496
  %v1498 = vmul.f32 %v1490, %v1497
  %v1500 = vrot.slane %v1498, 2
  %1502 = vmatprep.subr.mxu0 %v404
  %1503 = vmatpush1.msra.mxu0 %v403
  %1504 = vmatprep.subr.mxu0 %v400
  %1505 = vmatpush1.msra.mxu0 %v399
  %1506 = vmatprep.subr.mxu0 %v396
  %1507 = vmatpush1.msra.mxu0 %v395
  %1508 = vmatprep.subr.mxu0 %v392
  %1509 = vmatpush1.msra.mxu0 %v391
  %1510 = vmatprep.subr.mxu0 %v388
  %1511 = vmatpush1.msra.mxu0 %v387
  %1512 = vmatprep.subr.mxu0 %v384
  %1513 = vmatpush1.msra.mxu0 %v383
  %1514 = vmatprep.subr.mxu0 %v380
  %1515 = vmatpush1.msra.mxu0 %v379
  %1516 = vmatprep.subr.mxu0 %v376
  %1517 = vmatpush1.msra.mxu0 %v375
  %1518 = vmatprep.subr.mxu0 %v372
  %1519 = vmatpush1.msra.mxu0 %v371
  %1520 = vmatprep.subr.mxu0 %v368
  %1521 = vmatpush1.msra.mxu0 %v367
  %1522 = vmatprep.subr.mxu0 %v364
  %1523 = vmatpush1.msra.mxu0 %v363
  %1524 = vmatprep.subr.mxu0 %v360
  %1525 = vmatpush1.msra.mxu0 %v359
  %1526 = vmatprep.subr.mxu0 %v356
  %1527 = vmatpush1.msra.mxu0 %v355
  %1528 = vmatprep.subr.mxu0 %v352
  %1529 = vmatpush1.msra.mxu0 %v351
  %1530 = vmatprep.subr.mxu0 %v348
  %1531 = vmatpush1.msra.mxu0 %v347
  %1532 = vmatprep.subr.mxu0 %v344
  %1533 = vmatpush1.msra.mxu0 %v343
  %1534 = vmatprep.subr.mxu0 0.0
  %1535 = vmatpush2.msra.mxu0 0.0
  %1536 = vmatprep.subr.mxu0 0.0
  %1537 = vmatpush2.msra.mxu0 0.0
  %1538 = vmatprep.subr.mxu0 0.0
  %1539 = vmatpush2.msra.mxu0 0.0
  %1540 = vmatprep.subr.mxu0 0.0
  %1541 = vmatpush2.msra.mxu0 0.0
  %1542 = vmatprep.subr.mxu0 0.0
  %1543 = vmatpush2.msra.mxu0 0.0
  %1544 = vmatprep.subr.mxu0 0.0
  %1545 = vmatpush2.msra.mxu0 0.0
  %1546 = vmatprep.subr.mxu0 0.0
  %1547 = vmatpush2.msra.mxu0 0.0
  %1548 = vmatprep.subr.mxu0 0.0
  %1549 = vmatpush2.msra.mxu0 0.0
  %1550 = vmatprep.subr.mxu0 0.0
  %1551 = vmatpush2.msra.mxu0 0.0
  %1552 = vmatprep.subr.mxu0 0.0
  %1553 = vmatpush2.msra.mxu0 0.0
  %1554 = vmatprep.subr.mxu0 0.0
  %1555 = vmatpush2.msra.mxu0 0.0
  %1556 = vmatprep.subr.mxu0 0.0
  %1557 = vmatpush2.msra.mxu0 0.0
  %1558 = vmatprep.subr.mxu0 0.0
  %1559 = vmatpush2.msra.mxu0 0.0
  %1560 = vmatprep.subr.mxu0 0.0
  %1561 = vmatpush2.msra.mxu0 0.0
  %1562 = vmatprep.subr.mxu0 0.0
  %1563 = vmatpush2.msra.mxu0 0.0
  %1564 = vmatprep.subr.mxu0 0.0
  %1565 = vmatpush2.msra.mxu0 0.0
  %1566 = vmatprep.mubr.f32.mxu0 0.0
  %1567 = vmatmul.mubr.f32.gmra.mxu0 %v1500
  %v1568 = vpop.f32.mrf.mxu0
  %v1569 = vadd.f32 0.0, %v1568
  %v1570 = vpop.f32.mrf.mxu0
  %v1571 = vadd.f32 0.0, %v1570
  %1572 = vdwg.mxu0
  %1573 = vmatprep.subr.mxu0 %v406
  %1574 = vmatpush1.msra.mxu0 %v405
  %1575 = vmatprep.subr.mxu0 %v402
  %1576 = vmatpush1.msra.mxu0 %v401
  %1577 = vmatprep.subr.mxu0 %v398
  %1578 = vmatpush1.msra.mxu0 %v397
  %1579 = vmatprep.subr.mxu0 %v394
  %1580 = vmatpush1.msra.mxu0 %v393
  %1581 = vmatprep.subr.mxu0 %v390
  %1582 = vmatpush1.msra.mxu0 %v389
  %1583 = vmatprep.subr.mxu0 %v386
  %1584 = vmatpush1.msra.mxu0 %v385
  %1585 = vmatprep.subr.mxu0 %v382
  %1586 = vmatpush1.msra.mxu0 %v381
  %1587 = vmatprep.subr.mxu0 %v378
  %1588 = vmatpush1.msra.mxu0 %v377
  %1589 = vmatprep.subr.mxu0 %v374
  %1590 = vmatpush1.msra.mxu0 %v373
  %1591 = vmatprep.subr.mxu0 %v370
  %1592 = vmatpush1.msra.mxu0 %v369
  %1593 = vmatprep.subr.mxu0 %v366
  %1594 = vmatpush1.msra.mxu0 %v365
  %1595 = vmatprep.subr.mxu0 %v362
  %1596 = vmatpush1.msra.mxu0 %v361
  %1597 = vmatprep.subr.mxu0 %v358
  %1598 = vmatpush1.msra.mxu0 %v357
  %1599 = vmatprep.subr.mxu0 %v354
  %1600 = vmatpush1.msra.mxu0 %v353
  %1601 = vmatprep.subr.mxu0 %v350
  %1602 = vmatpush1.msra.mxu0 %v349
  %1603 = vmatprep.subr.mxu0 %v346
  %1604 = vmatpush1.msra.mxu0 %v345
  %1605 = vmatprep.subr.mxu0 0.0
  %1606 = vmatpush2.msra.mxu0 0.0
  %1607 = vmatprep.subr.mxu0 0.0
  %1608 = vmatpush2.msra.mxu0 0.0
  %1609 = vmatprep.subr.mxu0 0.0
  %1610 = vmatpush2.msra.mxu0 0.0
  %1611 = vmatprep.subr.mxu0 0.0
  %1612 = vmatpush2.msra.mxu0 0.0
  %1613 = vmatprep.subr.mxu0 0.0
  %1614 = vmatpush2.msra.mxu0 0.0
  %1615 = vmatprep.subr.mxu0 0.0
  %1616 = vmatpush2.msra.mxu0 0.0
  %1617 = vmatprep.subr.mxu0 0.0
  %1618 = vmatpush2.msra.mxu0 0.0
  %1619 = vmatprep.subr.mxu0 0.0
  %1620 = vmatpush2.msra.mxu0 0.0
  %1621 = vmatprep.subr.mxu0 0.0
  %1622 = vmatpush2.msra.mxu0 0.0
  %1623 = vmatprep.subr.mxu0 0.0
  %1624 = vmatpush2.msra.mxu0 0.0
  %1625 = vmatprep.subr.mxu0 0.0
  %1626 = vmatpush2.msra.mxu0 0.0
  %1627 = vmatprep.subr.mxu0 0.0
  %1628 = vmatpush2.msra.mxu0 0.0
  %1629 = vmatprep.subr.mxu0 0.0
  %1630 = vmatpush2.msra.mxu0 0.0
  %1631 = vmatprep.subr.mxu0 0.0
  %1632 = vmatpush2.msra.mxu0 0.0
  %1633 = vmatprep.subr.mxu0 0.0
  %1634 = vmatpush2.msra.mxu0 0.0
  %1635 = vmatprep.subr.mxu0 0.0
  %1636 = vmatpush2.msra.mxu0 0.0
  %1637 = vmatprep.mubr.f32.mxu0 0.0
  %1638 = vmatmul.mubr.f32.gmra.mxu0 %v1500
  %v1639 = vpop.f32.mrf.mxu0
  %v1640 = vadd.f32 0.0, %v1639
  %v1641 = vpop.f32.mrf.mxu0
  %v1642 = vadd.f32 0.0, %v1641
  %1643 = vdwg.mxu0
  %v1648 = vrot.slane %v1569, 4
  %v1649 = vrot.slane %v1571, 4
  %v1650 = vrot.slane %v1640, 4
  %v1651 = vrot.slane %v1642, 4
  %v1656 = vadd.f32 %v262, %v1648
  %v1657 = vadd.f32 %v264, %v1649
  %v1658 = vadd.f32 %v339, %v1650
  %v1659 = vadd.f32 %v341, %v1651
  %v1660 = vxor.u32 %v1656, 2147483648
  %v1661 = vmul.f32 %v1660, 1.442695
  %v1662 = vpow.pop %v1661
  %v1663 = vadd.f32 %v1662, 1.0
  %v1664 = vrcp.pop %v1663
  %v1665 = vmul.f32 1.0, %v1664
  %v1666 = vxor.u32 %v1657, 2147483648
  %v1667 = vmul.f32 %v1666, 1.442695
  %v1668 = vpow.pop %v1667
  %v1669 = vadd.f32 %v1668, 1.0
  %v1670 = vrcp.pop %v1669
  %v1671 = vmul.f32 1.0, %v1670
  %v1672 = vtanh.pop %v1658
  %v1673 = vxor.u32 %v1659, 2147483648
  %v1674 = vmul.f32 %v1673, 1.442695
  %v1675 = vpow.pop %v1674
  %v1676 = vadd.f32 %v1675, 1.0
  %v1677 = vrcp.pop %v1676
  %v1678 = vmul.f32 1.0, %v1677
  %v1680 = vrot.slane %v1496, 6
  %v1682 = vmul.f32 %v1671, %v1680
  %v1683 = vmul.f32 %v1665, %v1672
  %v1684 = vadd.f32 %v1682, %v1683
  %v1685 = vtanh.pop %v1684
  %v1686 = vmul.f32 %v1678, %v1685
  %v1688 = vrot.slane %v1686, 4
  %1690 = vmatprep.subr.mxu0 %v404
  %1691 = vmatpush1.msra.mxu0 %v403
  %1692 = vmatprep.subr.mxu0 %v400
  %1693 = vmatpush1.msra.mxu0 %v399
  %1694 = vmatprep.subr.mxu0 %v396
  %1695 = vmatpush1.msra.mxu0 %v395
  %1696 = vmatprep.subr.mxu0 %v392
  %1697 = vmatpush1.msra.mxu0 %v391
  %1698 = vmatprep.subr.mxu0 %v388
  %1699 = vmatpush1.msra.mxu0 %v387
  %1700 = vmatprep.subr.mxu0 %v384
  %1701 = vmatpush1.msra.mxu0 %v383
  %1702 = vmatprep.subr.mxu0 %v380
  %1703 = vmatpush1.msra.mxu0 %v379
  %1704 = vmatprep.subr.mxu0 %v376
  %1705 = vmatpush1.msra.mxu0 %v375
  %1706 = vmatprep.subr.mxu0 %v372
  %1707 = vmatpush1.msra.mxu0 %v371
  %1708 = vmatprep.subr.mxu0 %v368
  %1709 = vmatpush1.msra.mxu0 %v367
  %1710 = vmatprep.subr.mxu0 %v364
  %1711 = vmatpush1.msra.mxu0 %v363
  %1712 = vmatprep.subr.mxu0 %v360
  %1713 = vmatpush1.msra.mxu0 %v359
  %1714 = vmatprep.subr.mxu0 %v356
  %1715 = vmatpush1.msra.mxu0 %v355
  %1716 = vmatprep.subr.mxu0 %v352
  %1717 = vmatpush1.msra.mxu0 %v351
  %1718 = vmatprep.subr.mxu0 %v348
  %1719 = vmatpush1.msra.mxu0 %v347
  %1720 = vmatprep.subr.mxu0 %v344
  %1721 = vmatpush1.msra.mxu0 %v343
  %1722 = vmatprep.subr.mxu0 0.0
  %1723 = vmatpush2.msra.mxu0 0.0
  %1724 = vmatprep.subr.mxu0 0.0
  %1725 = vmatpush2.msra.mxu0 0.0
  %1726 = vmatprep.subr.mxu0 0.0
  %1727 = vmatpush2.msra.mxu0 0.0
  %1728 = vmatprep.subr.mxu0 0.0
  %1729 = vmatpush2.msra.mxu0 0.0
  %1730 = vmatprep.subr.mxu0 0.0
  %1731 = vmatpush2.msra.mxu0 0.0
  %1732 = vmatprep.subr.mxu0 0.0
  %1733 = vmatpush2.msra.mxu0 0.0
  %1734 = vmatprep.subr.mxu0 0.0
  %1735 = vmatpush2.msra.mxu0 0.0
  %1736 = vmatprep.subr.mxu0 0.0
  %1737 = vmatpush2.msra.mxu0 0.0
  %1738 = vmatprep.subr.mxu0 0.0
  %1739 = vmatpush2.msra.mxu0 0.0
  %1740 = vmatprep.subr.mxu0 0.0
  %1741 = vmatpush2.msra.mxu0 0.0
  %1742 = vmatprep.subr.mxu0 0.0
  %1743 = vmatpush2.msra.mxu0 0.0
  %1744 = vmatprep.subr.mxu0 0.0
  %1745 = vmatpush2.msra.mxu0 0.0
  %1746 = vmatprep.subr.mxu0 0.0
  %1747 = vmatpush2.msra.mxu0 0.0
  %1748 = vmatprep.subr.mxu0 0.0
  %1749 = vmatpush2.msra.mxu0 0.0
  %1750 = vmatprep.subr.mxu0 0.0
  %1751 = vmatpush2.msra.mxu0 0.0
  %1752 = vmatprep.subr.mxu0 0.0
  %1753 = vmatpush2.msra.mxu0 0.0
  %1754 = vmatprep.mubr.f32.mxu0 0.0
  %1755 = vmatmul.mubr.f32.gmra.mxu0 %v1688
  %v1756 = vpop.f32.mrf.mxu0
  %v1757 = vadd.f32 0.0, %v1756
  %v1758 = vpop.f32.mrf.mxu0
  %v1759 = vadd.f32 0.0, %v1758
  %1760 = vdwg.mxu0
  %1761 = vmatprep.subr.mxu0 %v406
  %1762 = vmatpush1.msra.mxu0 %v405
  %1763 = vmatprep.subr.mxu0 %v402
  %1764 = vmatpush1.msra.mxu0 %v401
  %1765 = vmatprep.subr.mxu0 %v398
  %1766 = vmatpush1.msra.mxu0 %v397
  %1767 = vmatprep.subr.mxu0 %v394
  %1768 = vmatpush1.msra.mxu0 %v393
  %1769 = vmatprep.subr.mxu0 %v390
  %1770 = vmatpush1.msra.mxu0 %v389
  %1771 = vmatprep.subr.mxu0 %v386
  %1772 = vmatpush1.msra.mxu0 %v385
  %1773 = vmatprep.subr.mxu0 %v382
  %1774 = vmatpush1.msra.mxu0 %v381
  %1775 = vmatprep.subr.mxu0 %v378
  %1776 = vmatpush1.msra.mxu0 %v377
  %1777 = vmatprep.subr.mxu0 %v374
  %1778 = vmatpush1.msra.mxu0 %v373
  %1779 = vmatprep.subr.mxu0 %v370
  %1780 = vmatpush1.msra.mxu0 %v369
  %1781 = vmatprep.subr.mxu0 %v366
  %1782 = vmatpush1.msra.mxu0 %v365
  %1783 = vmatprep.subr.mxu0 %v362
  %1784 = vmatpush1.msra.mxu0 %v361
  %1785 = vmatprep.subr.mxu0 %v358
  %1786 = vmatpush1.msra.mxu0 %v357
  %1787 = vmatprep.subr.mxu0 %v354
  %1788 = vmatpush1.msra.mxu0 %v353
  %1789 = vmatprep.subr.mxu0 %v350
  %1790 = vmatpush1.msra.mxu0 %v349
  %1791 = vmatprep.subr.mxu0 %v346
  %1792 = vmatpush1.msra.mxu0 %v345
  %1793 = vmatprep.subr.mxu0 0.0
  %1794 = vmatpush2.msra.mxu0 0.0
  %1795 = vmatprep.subr.mxu0 0.0
  %1796 = vmatpush2.msra.mxu0 0.0
  %1797 = vmatprep.subr.mxu0 0.0
  %1798 = vmatpush2.msra.mxu0 0.0
  %1799 = vmatprep.subr.mxu0 0.0
  %1800 = vmatpush2.msra.mxu0 0.0
  %1801 = vmatprep.subr.mxu0 0.0
  %1802 = vmatpush2.msra.mxu0 0.0
  %1803 = vmatprep.subr.mxu0 0.0
  %1804 = vmatpush2.msra.mxu0 0.0
  %1805 = vmatprep.subr.mxu0 0.0
  %1806 = vmatpush2.msra.mxu0 0.0
  %1807 = vmatprep.subr.mxu0 0.0
  %1808 = vmatpush2.msra.mxu0 0.0
  %1809 = vmatprep.subr.mxu0 0.0
  %1810 = vmatpush2.msra.mxu0 0.0
  %1811 = vmatprep.subr.mxu0 0.0
  %1812 = vmatpush2.msra.mxu0 0.0
  %1813 = vmatprep.subr.mxu0 0.0
  %1814 = vmatpush2.msra.mxu0 0.0
  %1815 = vmatprep.subr.mxu0 0.0
  %1816 = vmatpush2.msra.mxu0 0.0
  %1817 = vmatprep.subr.mxu0 0.0
  %1818 = vmatpush2.msra.mxu0 0.0
  %1819 = vmatprep.subr.mxu0 0.0
  %1820 = vmatpush2.msra.mxu0 0.0
  %1821 = vmatprep.subr.mxu0 0.0
  %1822 = vmatpush2.msra.mxu0 0.0
  %1823 = vmatprep.subr.mxu0 0.0
  %1824 = vmatpush2.msra.mxu0 0.0
  %1825 = vmatprep.mubr.f32.mxu0 0.0
  %1826 = vmatmul.mubr.f32.gmra.mxu0 %v1688
  %v1827 = vpop.f32.mrf.mxu0
  %v1828 = vadd.f32 0.0, %v1827
  %v1829 = vpop.f32.mrf.mxu0
  %v1830 = vadd.f32 0.0, %v1829
  %1831 = vdwg.mxu0
  %v1836 = vrot.slane %v1757, 2
  %v1837 = vrot.slane %v1759, 2
  %v1838 = vrot.slane %v1828, 2
  %v1839 = vrot.slane %v1830, 2
  %v1844 = vadd.f32 %v262, %v1836
  %v1845 = vadd.f32 %v264, %v1837
  %v1846 = vadd.f32 %v339, %v1838
  %v1847 = vadd.f32 %v341, %v1839
  %v1848 = vxor.u32 %v1844, 2147483648
  %v1849 = vmul.f32 %v1848, 1.442695
  %v1850 = vpow.pop %v1849
  %v1851 = vadd.f32 %v1850, 1.0
  %v1852 = vrcp.pop %v1851
  %v1853 = vmul.f32 1.0, %v1852
  %v1854 = vxor.u32 %v1845, 2147483648
  %v1855 = vmul.f32 %v1854, 1.442695
  %v1856 = vpow.pop %v1855
  %v1857 = vadd.f32 %v1856, 1.0
  %v1858 = vrcp.pop %v1857
  %v1859 = vmul.f32 1.0, %v1858
  %v1860 = vtanh.pop %v1846
  %v1861 = vxor.u32 %v1847, 2147483648
  %v1862 = vmul.f32 %v1861, 1.442695
  %v1863 = vpow.pop %v1862
  %v1864 = vadd.f32 %v1863, 1.0
  %v1865 = vrcp.pop %v1864
  %v1866 = vmul.f32 1.0, %v1865
  %v1868 = vrot.slane %v1684, 6
  %v1870 = vmul.f32 %v1859, %v1868
  %v1871 = vmul.f32 %v1853, %v1860
  %v1872 = vadd.f32 %v1870, %v1871
  %v1873 = vtanh.pop %v1872
  %v1874 = vmul.f32 %v1866, %v1873
  %v1875 = vld [vmem:[%s6] sm:$0xff]
  %v1876 = vld [vmem:[%s6 + $0x8] sm:$0xff]
  %v1877 = vld [vmem:[%s6 + $0x10] sm:$0xff]
  %v1878 = vld [vmem:[%s6 + $0x18] sm:$0xff]
  %v1879 = vld [vmem:[%s6 + $0x20] sm:$0xff]
  %v1880 = vld [vmem:[%s6 + $0x28] sm:$0xff]
  %v1881 = vld [vmem:[%s6 + $0x30] sm:$0xff]
  %v1882 = vld [vmem:[%s6 + $0x38] sm:$0xff]
  %v1883 = vld [vmem:[%s6 + $0x40] sm:$0xff]
  %v1884 = vld [vmem:[%s6 + $0x48] sm:$0xff]
  %v1885 = vld [vmem:[%s6 + $0x50] sm:$0xff]
  %v1886 = vld [vmem:[%s6 + $0x58] sm:$0xff]
  %v1887 = vld [vmem:[%s6 + $0x60] sm:$0xff]
  %v1888 = vld [vmem:[%s6 + $0x68] sm:$0xff]
  %v1889 = vld [vmem:[%s6 + $0x70] sm:$0xff]
  %v1890 = vld [vmem:[%s6 + $0x78] sm:$0xff]
  %v1891 = vld [vmem:[%s7] sm:$0x1]
  %v1893 = vlaneseq
  %v1894 = vshrl.u32 %v1893, 7
  %v1895 = vsub.s32 0, %v1894
  %v1896 = vrot.slane %v1891, %v1895
  %v1899 = vrot.slane %v1874, 6
  %1901 = vmatprep.subr.mxu0 0.0
  %1902 = vmatpush1.msra.mxu0 %v1890
  %1903 = vmatprep.subr.mxu0 0.0
  %1904 = vmatpush1.msra.mxu0 %v1889
  %1905 = vmatprep.subr.mxu0 0.0
  %1906 = vmatpush1.msra.mxu0 %v1888
  %1907 = vmatprep.subr.mxu0 0.0
  %1908 = vmatpush1.msra.mxu0 %v1887
  %1909 = vmatprep.subr.mxu0 0.0
  %1910 = vmatpush1.msra.mxu0 %v1886
  %1911 = vmatprep.subr.mxu0 0.0
  %1912 = vmatpush1.msra.mxu0 %v1885
  %1913 = vmatprep.subr.mxu0 0.0
  %1914 = vmatpush1.msra.mxu0 %v1884
  %1915 = vmatprep.subr.mxu0 0.0
  %1916 = vmatpush1.msra.mxu0 %v1883
  %1917 = vmatprep.subr.mxu0 0.0
  %1918 = vmatpush1.msra.mxu0 %v1882
  %1919 = vmatprep.subr.mxu0 0.0
  %1920 = vmatpush1.msra.mxu0 %v1881
  %1921 = vmatprep.subr.mxu0 0.0
  %1922 = vmatpush1.msra.mxu0 %v1880
  %1923 = vmatprep.subr.mxu0 0.0
  %1924 = vmatpush1.msra.mxu0 %v1879
  %1925 = vmatprep.subr.mxu0 0.0
  %1926 = vmatpush1.msra.mxu0 %v1878
  %1927 = vmatprep.subr.mxu0 0.0
  %1928 = vmatpush1.msra.mxu0 %v1877
  %1929 = vmatprep.subr.mxu0 0.0
  %1930 = vmatpush1.msra.mxu0 %v1876
  %1931 = vmatprep.subr.mxu0 0.0
  %1932 = vmatpush1.msra.mxu0 %v1875
  %1933 = vmatprep.subr.mxu0 0.0
  %1934 = vmatpush2.msra.mxu0 0.0
  %1935 = vmatprep.subr.mxu0 0.0
  %1936 = vmatpush2.msra.mxu0 0.0
  %1937 = vmatprep.subr.mxu0 0.0
  %1938 = vmatpush2.msra.mxu0 0.0
  %1939 = vmatprep.subr.mxu0 0.0
  %1940 = vmatpush2.msra.mxu0 0.0
  %1941 = vmatprep.subr.mxu0 0.0
  %1942 = vmatpush2.msra.mxu0 0.0
  %1943 = vmatprep.subr.mxu0 0.0
  %1944 = vmatpush2.msra.mxu0 0.0
  %1945 = vmatprep.subr.mxu0 0.0
  %1946 = vmatpush2.msra.mxu0 0.0
  %1947 = vmatprep.subr.mxu0 0.0
  %1948 = vmatpush2.msra.mxu0 0.0
  %1949 = vmatprep.subr.mxu0 0.0
  %1950 = vmatpush2.msra.mxu0 0.0
  %1951 = vmatprep.subr.mxu0 0.0
  %1952 = vmatpush2.msra.mxu0 0.0
  %1953 = vmatprep.subr.mxu0 0.0
  %1954 = vmatpush2.msra.mxu0 0.0
  %1955 = vmatprep.subr.mxu0 0.0
  %1956 = vmatpush2.msra.mxu0 0.0
  %1957 = vmatprep.subr.mxu0 0.0
  %1958 = vmatpush2.msra.mxu0 0.0
  %1959 = vmatprep.subr.mxu0 0.0
  %1960 = vmatpush2.msra.mxu0 0.0
  %1961 = vmatprep.subr.mxu0 0.0
  %1962 = vmatpush2.msra.mxu0 0.0
  %1963 = vmatprep.subr.mxu0 0.0
  %1964 = vmatpush2.msra.mxu0 0.0
  %1965 = vmatprep.mubr.f32.mxu0 0.0
  %1966 = vmatmul.mubr.f32.gmra.mxu0 %v1899
  %v1967 = vpop.f32.mrf.mxu0
  %v1968 = vadd.f32 %v1896, %v1967
  %v1969 = vpop.f32.mrf.mxu0
  %1970 = vdwg.mxu0
  %v1971 = vlaneseq
  %v1972 = vand.u32 %v1971, 127
  %vm1973 = vcmp.lt.s32.totalorder %v1972, 3
  %v1974 = vsel %vm1973, %v1968, -1e+30
  %vm1975 = vcmask 1041408
  %v1976 = vsel %vm1975, %v1974, -inf
  %1977 = vmax.xlane.f32.xlu0 %v1976
  %v1978 = vpop.xlane.xlu0 %1977
  %v1979 = vsub.f32 %v1974, %v1978
  %v1980 = vmul.f32 %v1979, 1.442695
  %v1981 = vpow.pop %v1980
  %v1982 = vsel %vm1975, %v1981, 0.0
  %1983 = vadd.xlane.f32.xlu0 %v1982
  %v1984 = vpop.xlane.xlu0 %1983
  %v1985 = vrcp.pop %v1984
  %v1986 = vmul.f32 %v1981, %v1985
  %vm1987 = vcmp.ge.s32.totalorder %v1972, 3
  %vm1988 = vcmp.lt.s32.totalorder %v1972, 5
  %vm1989 = vmand %vm1987, %vm1988
  %v1990 = vsel %vm1989, %v1968, -1e+30
  %v1991 = vsel %vm1975, %v1990, -inf
  %1992 = vmax.xlane.f32.xlu0 %v1991
  %v1993 = vpop.xlane.xlu0 %1992
  %v1994 = vsub.f32 %v1990, %v1993
  %v1995 = vmul.f32 %v1994, 1.442695
  %v1996 = vpow.pop %v1995
  %v1997 = vsel %vm1975, %v1996, 0.0
  %1998 = vadd.xlane.f32.xlu0 %v1997
  %v1999 = vpop.xlane.xlu0 %1998
  %v2000 = vrcp.pop %v1999
  %v2001 = vmul.f32 %v1996, %v2000
  %v2002 = vadd.f32 %v1986, %v2001
  %2003 = vst [vmem:[%s8] sm:$0x3] %v2002
  // Predicated region
  $region34: #{maneuver_forward.1} parent=0 // pred_check
    _
  $region35: #{maneuver_forward.1} parent=0 // pred_check_branch
    %2005 = sbr.rel (0) target = $region37
  $region36: #{maneuver_forward.1} parent=0 // pred_region
    _
  $region37: #{maneuver_forward.1} parent=0 // pred_fallthru
    _
  // Predicated region
  $region38: #{maneuver_forward.1} parent=0 // pred_check
    _
  $region39: #{maneuver_forward.1} parent=0 // pred_check_branch
    %2007 = sbr.rel (0) target = $region41
  $region40: #{maneuver_forward.1} parent=0 // pred_region
    _
  $region41: #{maneuver_forward.1} parent=0 // pred_fallthru
    _

</llo_original>
